<compile_context>
chip_gen: v7x
topology: tpu7x:2x2x1
jax: 0.10.0
libtpu: 0.0.40
codegen_flags: <defaults>
</compile_context>

<pallas_src>
import math

import jax
import jax.numpy as jnp
from jax.experimental import pallas as pl
from jax.experimental.pallas import tpu as pltpu

# ----------------------------- configuration --------------------------------
SRC_VOCAB_SIZE = 50
EMBED_SIZE = 32                      # E
NUM_LAYERS = 2
HEADS = 4                            # H
HEAD_DIM = EMBED_SIZE // HEADS       # D
FORWARD_EXPANSION = 4
FF_DIM = FORWARD_EXPANSION * EMBED_SIZE   # F = 128 (lane-dense)
MAX_LENGTH = 16
VOCAB_PAD = 128                      # vocab padded to a full lane group
LN_EPS = 1e-5
NEG_BIG = -1e20


def _layer_norm(x, gamma, beta):
    mu = jnp.mean(x, axis=-1, keepdims=True)
    var = jnp.mean((x - mu) ** 2, axis=-1, keepdims=True)   # biased, like torch
    return (x - mu) * jax.lax.rsqrt(var + LN_EPS) * gamma + beta


# ------------------------------ Pallas kernel --------------------------------
def encoder_kernel(ids_ref, table_ref, bias_ref, mats_ref, w2t_ref, o_ref):
    """Whole encoder in one invocation (no grid; everything VMEM-resident).

    ids_ref   : (NS, 2)         int32  [:,0] token id, [:,1] VOCAB_PAD + seq position
    table_ref : (VP+ML, E)      f32    [padded word-embedding ; position embedding]
    bias_ref  : (H*NS, H*NS)    f32    0 keep / -1e20 (cross-head, cross-batch, masked)
    mats_ref  : (L, E+8, 2E+F)  f32    rows 0:E = [G | VWoT | W1^T], rows E:E+8 = bias/LN vecs
    w2t_ref   : (L, F, E)       f32    W2^T (pre-transposed at pack time)
    o_ref     : (NS, E)         f32
    """
    NS = ids_ref.shape[0]
    VPA, E = table_ref.shape
    HNS = bias_ref.shape[0]
    H = HNS // NS
    D = E // H
    L = mats_ref.shape[0]
    F = w2t_ref.shape[1]

    # --- fused word + positional embedding lookup: "two-hot" matmul ----------
    ids = ids_ref[...]                                            # (NS, 2)
    col = jax.lax.broadcasted_iota(jnp.int32, (NS, VPA), 1)
    twohot = jnp.logical_or(col == ids[:, 0:1],
                            col == ids[:, 1:2]).astype(jnp.float32)   # (NS, VPA)
    x = jnp.dot(twohot, table_ref[...],
                preferred_element_type=jnp.float32)               # (NS, E)

    bias = bias_ref[...]                                          # (HNS, HNS)

    # per-head column-band selectors (loop invariant)
    colE = jax.lax.broadcasted_iota(jnp.int32, (NS, E), 1)
    band = [(colE >= h * D) & (colE < (h + 1) * D) for h in range(H)]

    for l in range(L):                      # static unroll over layers
        M = mats_ref[l]                     # (E+8, 2E+F)
        W2T = w2t_ref[l]                    # (F, E)
        G = M[0:E, 0:E]                     # scale * tile(Wq^T Wk, (H,H))
        VWoT = M[0:E, E:2 * E]              # blockdiag(Wv^T) @ Wo^T
        W1T = M[0:E, 2 * E:2 * E + F]
        bo = M[E + 0:E + 1, 0:E]
        g1 = M[E + 1:E + 2, 0:E]
        b1 = M[E + 2:E + 3, 0:E]
        bff1 = M[E + 3:E + 4, 0:F]
        bff2 = M[E + 4:E + 5, 0:E]
        g2 = M[E + 5:E + 6, 0:E]
        b2 = M[E + 6:E + 7, 0:E]

        # stacked-heads input: rows [h*NS:(h+1)*NS] hold x with only band-h columns kept
        x_m = jnp.concatenate([jnp.where(band[h], x, 0.0) for h in range(H)],
                              axis=0)                              # (HNS, E)

        # all-head, all-batch attention scores in one shot:
        #   energy[h*NS+q, h*NS+k] = scale * (Q_h[q] . K_h[k]);  off-block entries
        #   are garbage and are killed by the additive bias (exp -> 0).
        tmp = jnp.dot(x_m, G, preferred_element_type=jnp.float32)          # (HNS, E)
        energy = jax.lax.dot_general(tmp, x_m, (((1,), (1,)), ((), ())),
                                     preferred_element_type=jnp.float32)   # (HNS, HNS)
        logits = energy + bias
        m = jnp.max(logits, axis=-1, keepdims=True)
        p = jnp.exp(logits - m)
        attn = p * pl.reciprocal(jnp.sum(p, axis=-1, keepdims=True), approx=True)

        # V and Wo fused: vw[h*NS+k] = V_h[k] @ Wo^T[hD:(h+1)D, :]
        vw = jnp.dot(x_m, VWoT, preferred_element_type=jnp.float32)        # (HNS, E)
        res = jnp.dot(attn, vw, preferred_element_type=jnp.float32)        # (HNS, E)
        # sum over head row-blocks == concat(heads) @ Wo^T
        attn_proj = res[0:NS]
        for h in range(1, H):
            attn_proj = attn_proj + res[h * NS:(h + 1) * NS]
        attn_out = attn_proj + bo

        # residual + LayerNorm1 (dropout == identity in eval mode)
        x1 = _layer_norm(attn_out + x, g1, b1)

        # feed-forward: relu(x1 @ W1^T + b1) @ W2^T + b2   (W2 pre-transposed)
        hid = jnp.maximum(jnp.dot(x1, W1T, preferred_element_type=jnp.float32) + bff1, 0.0)
        ffn = jnp.dot(hid, W2T, preferred_element_type=jnp.float32) + bff2

        # residual + LayerNorm2
        x = _layer_norm(ffn + x1, g2, b2)

    o_ref[...] = x.astype(o_ref.dtype)


# -------------------- one-time wrapper-side weight packing -------------------
def _pack_layer(layer):
    wq, wk, wv, wo, bo, g1, b1, w1, bff1, w2, bff2, g2, b2 = layer
    E, H, F = EMBED_SIZE, HEADS, FF_DIM
    scale = 1.0 / math.sqrt(float(E))          # reference divides by sqrt(E)
    hi = jax.lax.Precision.HIGHEST             # one-time pack-time matmuls in f32
    G = scale * jnp.tile(jnp.dot(wq.T, wk, precision=hi), (H, H))         # (E, E)
    VWoT = jnp.dot(jnp.kron(jnp.eye(H, dtype=jnp.float32), wv.T), wo.T,
                   precision=hi)                                          # (E, E)
    mat = jnp.concatenate([G, VWoT, w1.T], axis=1)                        # (E, 2E+F)

    width = 2 * E + F
    def row(v):
        return jnp.pad(v, (0, width - v.shape[0]))
    vec = jnp.stack([row(bo), row(g1), row(b1), row(bff1), row(bff2),
                     row(g2), row(b2), jnp.zeros((width,), jnp.float32)])  # (8, 2E+F)
    slab = jnp.concatenate([mat, vec], axis=0).astype(jnp.float32)         # (E+8, 2E+F)
    return slab, w2.T.astype(jnp.float32)                                  # , (F, E)


def pack_params(params):
    """Runs ONCE (outside the jitted forward). Produces DMA-ready slabs."""
    V, E = params["word_embedding"].shape
    assert V <= VOCAB_PAD and E == EMBED_SIZE
    table = jnp.concatenate(
        [jnp.pad(params["word_embedding"].astype(jnp.float32),
                 ((0, VOCAB_PAD - V), (0, 0))),
         params["position_embedding"].astype(jnp.float32)], axis=0)   # (VP+ML, E)
    packed = [_pack_layer(lp) for lp in params["layers"]]
    return {
        "table": table,
        "slabs": jnp.stack([s for s, _ in packed]),        # (L, E+8, 2E+F)
        "w2t": jnp.stack([w for _, w in packed]),           # (L, F, E)
    }


# ------------------------------- jitted forward ------------------------------
@jax.jit
def encoder_forward(packed, token_ids, mask):
    """token_ids: (N, S) int32, mask: (N, S) {0,1}. Returns (N, S, E) f32."""
    N, S = token_ids.shape
    NS = N * S
    H = HEADS
    HNS = H * NS
    table = packed["table"]
    E = table.shape[1]

    # token id + (offset) position id per flat row -> "two-hot" lookup in-kernel
    pos_ids = VOCAB_PAD + (jnp.arange(NS, dtype=jnp.int32) % S)
    ids2 = jnp.stack([token_ids.reshape(NS).astype(jnp.int32), pos_ids], axis=1)

    # additive attention bias over the stacked (head, batch*seq) axes:
    # 0 where same head AND same batch AND key kept; -1e20 otherwise.
    keep = mask.reshape(NS) != 0
    pp = jnp.arange(HNS, dtype=jnp.int32) % NS          # flat (batch*seq) position
    hh = jnp.arange(HNS, dtype=jnp.int32) // NS         # head index
    bb = pp // S                                        # batch index
    allow = (hh[:, None] == hh[None, :]) & (bb[:, None] == bb[None, :]) & keep[pp][None, :]
    bias = jnp.where(allow, 0.0, NEG_BIG).astype(jnp.float32)   # (HNS, HNS)

    vmem = pl.BlockSpec(memory_space=pltpu.MemorySpace.VMEM)
    out = pl.pallas_call(
        encoder_kernel,
        out_shape=jax.ShapeDtypeStruct((NS, E), jnp.float32),
        in_specs=[vmem] * 5,
        out_specs=vmem,
    )(ids2, table, bias, packed["slabs"], packed["w2t"])
    return out.reshape(N, S, E)


# ------------------------------ parameter init -------------------------------
def init_params(key):
    """Deterministic synthetic parameters matching the PyTorch module shapes."""
    keys = iter(jax.random.split(key, 2 + NUM_LAYERS * 6))

    def nrm(shape, scale=0.02):
        return (scale * jax.random.normal(next(keys), shape)).astype(jnp.float32)

    params = {
        "word_embedding": nrm((SRC_VOCAB_SIZE, EMBED_SIZE)),
        "position_embedding": nrm((MAX_LENGTH, EMBED_SIZE)),
        "layers": [],
    }
    for _ in range(NUM_LAYERS):
        wq = nrm((HEAD_DIM, HEAD_DIM))
        wk = nrm((HEAD_DIM, HEAD_DIM))
        wv = nrm((HEAD_DIM, HEAD_DIM))
        wo = nrm((EMBED_SIZE, EMBED_SIZE))
        bo = jnp.zeros((EMBED_SIZE,), jnp.float32)
        g1 = jnp.ones((EMBED_SIZE,), jnp.float32)
        b1 = jnp.zeros((EMBED_SIZE,), jnp.float32)
        w1 = nrm((FF_DIM, EMBED_SIZE))
        bff1 = jnp.zeros((FF_DIM,), jnp.float32)
        w2 = nrm((EMBED_SIZE, FF_DIM))
        bff2 = jnp.zeros((EMBED_SIZE,), jnp.float32)
        g2 = jnp.ones((EMBED_SIZE,), jnp.float32)
        b2 = jnp.zeros((EMBED_SIZE,), jnp.float32)
        params["layers"].append((wq, wk, wv, wo, bo, g1, b1, w1, bff1, w2, bff2, g2, b2))
    return params


# ------------------------- pure-JAX reference (sanity) ------------------------
def encoder_reference(params, token_ids, mask):
    N, S = token_ids.shape
    E, H, D = EMBED_SIZE, HEADS, HEAD_DIM
    x = params["word_embedding"][token_ids] + params["position_embedding"][:S][None]
    mask4 = mask[:, None, None, :]                                   # (N,1,1,S)
    for (wq, wk, wv, wo, bo, g1, b1, w1, bff1, w2, bff2, g2, b2) in params["layers"]:
        xh = x.reshape(N, S, H, D)
        q = jnp.einsum("nshd,od->nsho", xh, wq)
        k = jnp.einsum("nshd,od->nsho", xh, wk)
        v = jnp.einsum("nshd,od->nsho", xh, wv)
        energy = jnp.einsum("nqhd,nkhd->nhqk", q, k)
        energy = jnp.where(mask4 == 0, NEG_BIG, energy)
        attn = jax.nn.softmax(energy / math.sqrt(E), axis=3)
        heads_out = jnp.einsum("nhqk,nkhd->nqhd", attn, v).reshape(N, S, E)
        x1 = _layer_norm(heads_out @ wo.T + bo + x, g1, b1)
        ffn = jnp.maximum(x1 @ w1.T + bff1, 0.0) @ w2.T + bff2
        x = _layer_norm(ffn + x1, g2, b2)
    return x


# ----------------------------------- main -------------------------------------
if __name__ == "__main__":
    params = init_params(jax.random.PRNGKey(0))
    packed = pack_params(params)            # one-time packing, outside the hot path

    N, S = 2, 8
    k_tok, _ = jax.random.split(jax.random.PRNGKey(0))
    token_ids = jax.random.randint(k_tok, (N, S), 0, SRC_VOCAB_SIZE, dtype=jnp.int32)
    # source mask: 1 = keep, 0 = masked (last two key positions of batch 1 masked)
    mask = jnp.ones((N, S), jnp.int32).at[1, -2:].set(0)

    out = jax.block_until_ready(encoder_forward(packed, token_ids, mask))

    assert out.shape == (N, S, EMBED_SIZE)
    assert bool(jnp.all(jnp.isfinite(out)))

    ref = encoder_reference(params, token_ids, mask)
    max_err = float(jnp.max(jnp.abs(out - ref)))
    assert max_err < 5e-2, f"mismatch vs pure-JAX reference: {max_err}"
    print("KERNEL_OK")
</pallas_src>

<mosaic_0001>
module attributes {stable_mosaic.version = 11 : i64} {
  func.func @encoder_kernel(%arg0: memref<16x2xi32, #tpu.memory_space<vmem>>, %arg1: memref<144x32xf32, #tpu.memory_space<vmem>>, %arg2: memref<64x64xf32, #tpu.memory_space<vmem>>, %arg3: memref<2x40x192xf32, #tpu.memory_space<vmem>>, %arg4: memref<2x128x32xf32, #tpu.memory_space<vmem>>, %arg5: memref<16x32xf32, #tpu.memory_space<vmem>>) attributes {dimension_semantics = [], scalar_prefetch = 0 : i64, scratch_operands = 0 : i64, tpu.core_type = #tpu.core_type<tc>} {
    %c0 = arith.constant 0 : index
    %c0_0 = arith.constant 0 : index
    %0 = vector.load %arg0[%c0, %c0_0] : memref<16x2xi32, #tpu.memory_space<vmem>>, vector<16x2xi32>
    %1 = tpu.iota {dimensions = array<i32: 1>} : vector<16x144xi32>
    %2 = vector.extract_strided_slice %0 {offsets = [0, 0], sizes = [16, 1], strides = [1, 1]} : vector<16x2xi32> to vector<16x1xi32>
    %3 = vector.broadcast %2 : vector<16x1xi32> to vector<16x144xi32>
    %4 = arith.cmpi eq, %1, %3 : vector<16x144xi32>
    %5 = vector.extract_strided_slice %0 {offsets = [0, 1], sizes = [16, 1], strides = [1, 1]} : vector<16x2xi32> to vector<16x1xi32>
    %6 = vector.broadcast %5 : vector<16x1xi32> to vector<16x144xi32>
    %7 = arith.cmpi eq, %1, %6 : vector<16x144xi32>
    %8 = arith.ori %4, %7 : vector<16x144xi1>
    %9 = arith.extui %8 : vector<16x144xi1> to vector<16x144xi32>
    %10 = arith.sitofp %9 : vector<16x144xi32> to vector<16x144xf32>
    %c0_1 = arith.constant 0 : index
    %c0_2 = arith.constant 0 : index
    %11 = vector.load %arg1[%c0_1, %c0_2] : memref<144x32xf32, #tpu.memory_space<vmem>>, vector<144x32xf32>
    %cst = arith.constant dense<0.000000e+00> : vector<16x32xf32>
    %12 = tpu.matmul %10, %11, %cst {dimension_numbers = #tpu.dot_dimension_numbers<[1], [0], [0], [1], [0, 0, 1, 1], [], []>} : vector<16x144xf32>, vector<144x32xf32>, vector<16x32xf32> -> vector<16x32xf32>
    %c0_3 = arith.constant 0 : index
    %c0_4 = arith.constant 0 : index
    %13 = vector.load %arg2[%c0_3, %c0_4] : memref<64x64xf32, #tpu.memory_space<vmem>>, vector<64x64xf32>
    %14 = tpu.iota {dimensions = array<i32: 1>} : vector<16x32xi32>
    %c0_i32 = arith.constant 0 : i32
    %15 = vector.broadcast %c0_i32 : i32 to vector<16x32xi32>
    %16 = arith.cmpi sge, %14, %15 : vector<16x32xi32>
    %c8_i32 = arith.constant 8 : i32
    %17 = vector.broadcast %c8_i32 : i32 to vector<16x32xi32>
    %18 = arith.cmpi slt, %14, %17 : vector<16x32xi32>
    %19 = arith.andi %16, %18 : vector<16x32xi1>
    %c8_i32_5 = arith.constant 8 : i32
    %20 = vector.broadcast %c8_i32_5 : i32 to vector<16x32xi32>
    %21 = arith.cmpi sge, %14, %20 : vector<16x32xi32>
    %c16_i32 = arith.constant 16 : i32
    %22 = vector.broadcast %c16_i32 : i32 to vector<16x32xi32>
    %23 = arith.cmpi slt, %14, %22 : vector<16x32xi32>
    %24 = arith.andi %21, %23 : vector<16x32xi1>
    %c16_i32_6 = arith.constant 16 : i32
    %25 = vector.broadcast %c16_i32_6 : i32 to vector<16x32xi32>
    %26 = arith.cmpi sge, %14, %25 : vector<16x32xi32>
    %c24_i32 = arith.constant 24 : i32
    %27 = vector.broadcast %c24_i32 : i32 to vector<16x32xi32>
    %28 = arith.cmpi slt, %14, %27 : vector<16x32xi32>
    %29 = arith.andi %26, %28 : vector<16x32xi1>
    %c24_i32_7 = arith.constant 24 : i32
    %30 = vector.broadcast %c24_i32_7 : i32 to vector<16x32xi32>
    %31 = arith.cmpi sge, %14, %30 : vector<16x32xi32>
    %c32_i32 = arith.constant 32 : i32
    %32 = vector.broadcast %c32_i32 : i32 to vector<16x32xi32>
    %33 = arith.cmpi slt, %14, %32 : vector<16x32xi32>
    %34 = arith.andi %31, %33 : vector<16x32xi1>
    %c0_8 = arith.constant 0 : index
    %c0_9 = arith.constant 0 : index
    %c0_10 = arith.constant 0 : index
    %35 = vector.load %arg3[%c0_8, %c0_9, %c0_10] : memref<2x40x192xf32, #tpu.memory_space<vmem>>, vector<1x40x192xf32>
    %36 = vector.shape_cast %35 : vector<1x40x192xf32> to vector<40x192xf32>
    %c0_11 = arith.constant 0 : index
    %c0_12 = arith.constant 0 : index
    %c0_13 = arith.constant 0 : index
    %37 = vector.load %arg4[%c0_11, %c0_12, %c0_13] : memref<2x128x32xf32, #tpu.memory_space<vmem>>, vector<1x128x32xf32>
    %38 = vector.shape_cast %37 : vector<1x128x32xf32> to vector<128x32xf32>
    %39 = vector.extract_strided_slice %36 {offsets = [0, 0], sizes = [32, 32], strides = [1, 1]} : vector<40x192xf32> to vector<32x32xf32>
    %40 = vector.extract_strided_slice %36 {offsets = [0, 32], sizes = [32, 32], strides = [1, 1]} : vector<40x192xf32> to vector<32x32xf32>
    %41 = vector.extract_strided_slice %36 {offsets = [0, 64], sizes = [32, 128], strides = [1, 1]} : vector<40x192xf32> to vector<32x128xf32>
    %42 = vector.extract_strided_slice %36 {offsets = [32, 0], sizes = [1, 32], strides = [1, 1]} : vector<40x192xf32> to vector<1x32xf32>
    %43 = vector.extract_strided_slice %36 {offsets = [33, 0], sizes = [1, 32], strides = [1, 1]} : vector<40x192xf32> to vector<1x32xf32>
    %44 = vector.extract_strided_slice %36 {offsets = [34, 0], sizes = [1, 32], strides = [1, 1]} : vector<40x192xf32> to vector<1x32xf32>
    %45 = vector.extract_strided_slice %36 {offsets = [35, 0], sizes = [1, 128], strides = [1, 1]} : vector<40x192xf32> to vector<1x128xf32>
    %46 = vector.extract_strided_slice %36 {offsets = [36, 0], sizes = [1, 32], strides = [1, 1]} : vector<40x192xf32> to vector<1x32xf32>
    %47 = vector.extract_strided_slice %36 {offsets = [37, 0], sizes = [1, 32], strides = [1, 1]} : vector<40x192xf32> to vector<1x32xf32>
    %48 = vector.extract_strided_slice %36 {offsets = [38, 0], sizes = [1, 32], strides = [1, 1]} : vector<40x192xf32> to vector<1x32xf32>
    %cst_14 = arith.constant 0.000000e+00 : f32
    %49 = vector.broadcast %cst_14 : f32 to vector<16x32xf32>
    %50 = arith.select %19, %12, %49 : vector<16x32xi1>, vector<16x32xf32>
    %cst_15 = arith.constant 0.000000e+00 : f32
    %51 = vector.broadcast %cst_15 : f32 to vector<16x32xf32>
    %52 = arith.select %24, %12, %51 : vector<16x32xi1>, vector<16x32xf32>
    %cst_16 = arith.constant 0.000000e+00 : f32
    %53 = vector.broadcast %cst_16 : f32 to vector<16x32xf32>
    %54 = arith.select %29, %12, %53 : vector<16x32xi1>, vector<16x32xf32>
    %cst_17 = arith.constant 0.000000e+00 : f32
    %55 = vector.broadcast %cst_17 : f32 to vector<16x32xf32>
    %56 = arith.select %34, %12, %55 : vector<16x32xi1>, vector<16x32xf32>
    %57 = tpu.concatenate %50, %52, %54, %56 in 0 : vector<16x32xf32>, vector<16x32xf32>, vector<16x32xf32>, vector<16x32xf32> -> vector<64x32xf32>
    %cst_18 = arith.constant dense<0.000000e+00> : vector<64x32xf32>
    %58 = tpu.matmul %57, %39, %cst_18 {dimension_numbers = #tpu.dot_dimension_numbers<[1], [0], [0], [1], [0, 0, 1, 1], [], []>} : vector<64x32xf32>, vector<32x32xf32>, vector<64x32xf32> -> vector<64x32xf32>
    %cst_19 = arith.constant dense<0.000000e+00> : vector<64x64xf32>
    %59 = tpu.matmul %58, %57, %cst_19 {dimension_numbers = #tpu.dot_dimension_numbers<[1], [1], [0], [0], [0, 0, 1, 0], [], []>} : vector<64x32xf32>, vector<64x32xf32>, vector<64x64xf32> -> vector<64x64xf32>
    %60 = arith.addf %59, %13 : vector<64x64xf32>
    %cst_20 = arith.constant dense<0xFF800000> : vector<64xf32>
    %61 = vector.multi_reduction <maximumf>, %60, %cst_20 [1] : vector<64x64xf32> to vector<64xf32>
    %62 = vector.shape_cast %61 : vector<64xf32> to vector<64x1xf32>
    %63 = vector.broadcast %62 : vector<64x1xf32> to vector<64x64xf32>
    %64 = arith.subf %60, %63 : vector<64x64xf32>
    %65 = math.exp %64 : vector<64x64xf32>
    %cst_21 = arith.constant dense<0.000000e+00> : vector<64xf32>
    %66 = vector.multi_reduction <add>, %65, %cst_21 [1] : vector<64x64xf32> to vector<64xf32>
    %67 = vector.shape_cast %66 : vector<64xf32> to vector<64x1xf32>
    %68 = tpu.reciprocal %67 {approx = true} : vector<64x1xf32> -> vector<64x1xf32>
    %69 = vector.broadcast %68 : vector<64x1xf32> to vector<64x64xf32>
    %70 = arith.mulf %65, %69 : vector<64x64xf32>
    %cst_22 = arith.constant dense<0.000000e+00> : vector<64x32xf32>
    %71 = tpu.matmul %57, %40, %cst_22 {dimension_numbers = #tpu.dot_dimension_numbers<[1], [0], [0], [1], [0, 0, 1, 1], [], []>} : vector<64x32xf32>, vector<32x32xf32>, vector<64x32xf32> -> vector<64x32xf32>
    %cst_23 = arith.constant dense<0.000000e+00> : vector<64x32xf32>
    %72 = tpu.matmul %70, %71, %cst_23 {dimension_numbers = #tpu.dot_dimension_numbers<[1], [0], [0], [1], [0, 0, 1, 1], [], []>} : vector<64x64xf32>, vector<64x32xf32>, vector<64x32xf32> -> vector<64x32xf32>
    %73 = vector.extract_strided_slice %72 {offsets = [0, 0], sizes = [16, 32], strides = [1, 1]} : vector<64x32xf32> to vector<16x32xf32>
    %74 = vector.extract_strided_slice %72 {offsets = [16, 0], sizes = [16, 32], strides = [1, 1]} : vector<64x32xf32> to vector<16x32xf32>
    %75 = arith.addf %73, %74 : vector<16x32xf32>
    %76 = vector.extract_strided_slice %72 {offsets = [32, 0], sizes = [16, 32], strides = [1, 1]} : vector<64x32xf32> to vector<16x32xf32>
    %77 = arith.addf %75, %76 : vector<16x32xf32>
    %78 = vector.extract_strided_slice %72 {offsets = [48, 0], sizes = [16, 32], strides = [1, 1]} : vector<64x32xf32> to vector<16x32xf32>
    %79 = arith.addf %77, %78 : vector<16x32xf32>
    %80 = vector.broadcast %42 : vector<1x32xf32> to vector<16x32xf32>
    %81 = arith.addf %79, %80 : vector<16x32xf32>
    %82 = arith.addf %81, %12 : vector<16x32xf32>
    %cst_24 = arith.constant dense<0.000000e+00> : vector<16xf32>
    %83 = vector.multi_reduction <add>, %82, %cst_24 [1] : vector<16x32xf32> to vector<16xf32>
    %84 = vector.shape_cast %83 : vector<16xf32> to vector<16x1xf32>
    %cst_25 = arith.constant 3.200000e+01 : f32
    %85 = vector.broadcast %cst_25 : f32 to vector<16x1xf32>
    %86 = arith.divf %84, %85 : vector<16x1xf32>
    %87 = vector.broadcast %86 : vector<16x1xf32> to vector<16x32xf32>
    %88 = arith.subf %82, %87 : vector<16x32xf32>
    %89 = arith.mulf %88, %88 : vector<16x32xf32>
    %cst_26 = arith.constant dense<0.000000e+00> : vector<16xf32>
    %90 = vector.multi_reduction <add>, %89, %cst_26 [1] : vector<16x32xf32> to vector<16xf32>
    %91 = vector.shape_cast %90 : vector<16xf32> to vector<16x1xf32>
    %cst_27 = arith.constant 3.200000e+01 : f32
    %92 = vector.broadcast %cst_27 : f32 to vector<16x1xf32>
    %93 = arith.divf %91, %92 : vector<16x1xf32>
    %94 = vector.broadcast %86 : vector<16x1xf32> to vector<16x32xf32>
    %95 = arith.subf %82, %94 : vector<16x32xf32>
    %cst_28 = arith.constant 9.99999974E-6 : f32
    %96 = vector.broadcast %cst_28 : f32 to vector<16x1xf32>
    %97 = arith.addf %93, %96 : vector<16x1xf32>
    %98 = math.rsqrt %97 : vector<16x1xf32>
    %99 = vector.broadcast %98 : vector<16x1xf32> to vector<16x32xf32>
    %100 = arith.mulf %95, %99 : vector<16x32xf32>
    %101 = vector.broadcast %43 : vector<1x32xf32> to vector<16x32xf32>
    %102 = arith.mulf %100, %101 : vector<16x32xf32>
    %103 = vector.broadcast %44 : vector<1x32xf32> to vector<16x32xf32>
    %104 = arith.addf %102, %103 : vector<16x32xf32>
    %cst_29 = arith.constant dense<0.000000e+00> : vector<16x128xf32>
    %105 = tpu.matmul %104, %41, %cst_29 {dimension_numbers = #tpu.dot_dimension_numbers<[1], [0], [0], [1], [0, 0, 1, 1], [], []>} : vector<16x32xf32>, vector<32x128xf32>, vector<16x128xf32> -> vector<16x128xf32>
    %106 = vector.broadcast %45 : vector<1x128xf32> to vector<16x128xf32>
    %107 = arith.addf %105, %106 : vector<16x128xf32>
    %cst_30 = arith.constant 0.000000e+00 : f32
    %108 = vector.broadcast %cst_30 : f32 to vector<16x128xf32>
    %109 = arith.maximumf %107, %108 : vector<16x128xf32>
    %cst_31 = arith.constant dense<0.000000e+00> : vector<16x32xf32>
    %110 = tpu.matmul %109, %38, %cst_31 {dimension_numbers = #tpu.dot_dimension_numbers<[1], [0], [0], [1], [0, 0, 1, 1], [], []>} : vector<16x128xf32>, vector<128x32xf32>, vector<16x32xf32> -> vector<16x32xf32>
    %111 = vector.broadcast %46 : vector<1x32xf32> to vector<16x32xf32>
    %112 = arith.addf %110, %111 : vector<16x32xf32>
    %113 = arith.addf %112, %104 : vector<16x32xf32>
    %cst_32 = arith.constant dense<0.000000e+00> : vector<16xf32>
    %114 = vector.multi_reduction <add>, %113, %cst_32 [1] : vector<16x32xf32> to vector<16xf32>
    %115 = vector.shape_cast %114 : vector<16xf32> to vector<16x1xf32>
    %cst_33 = arith.constant 3.200000e+01 : f32
    %116 = vector.broadcast %cst_33 : f32 to vector<16x1xf32>
    %117 = arith.divf %115, %116 : vector<16x1xf32>
    %118 = vector.broadcast %117 : vector<16x1xf32> to vector<16x32xf32>
    %119 = arith.subf %113, %118 : vector<16x32xf32>
    %120 = arith.mulf %119, %119 : vector<16x32xf32>
    %cst_34 = arith.constant dense<0.000000e+00> : vector<16xf32>
    %121 = vector.multi_reduction <add>, %120, %cst_34 [1] : vector<16x32xf32> to vector<16xf32>
    %122 = vector.shape_cast %121 : vector<16xf32> to vector<16x1xf32>
    %cst_35 = arith.constant 3.200000e+01 : f32
    %123 = vector.broadcast %cst_35 : f32 to vector<16x1xf32>
    %124 = arith.divf %122, %123 : vector<16x1xf32>
    %125 = vector.broadcast %117 : vector<16x1xf32> to vector<16x32xf32>
    %126 = arith.subf %113, %125 : vector<16x32xf32>
    %cst_36 = arith.constant 9.99999974E-6 : f32
    %127 = vector.broadcast %cst_36 : f32 to vector<16x1xf32>
    %128 = arith.addf %124, %127 : vector<16x1xf32>
    %129 = math.rsqrt %128 : vector<16x1xf32>
    %130 = vector.broadcast %129 : vector<16x1xf32> to vector<16x32xf32>
    %131 = arith.mulf %126, %130 : vector<16x32xf32>
    %132 = vector.broadcast %47 : vector<1x32xf32> to vector<16x32xf32>
    %133 = arith.mulf %131, %132 : vector<16x32xf32>
    %134 = vector.broadcast %48 : vector<1x32xf32> to vector<16x32xf32>
    %135 = arith.addf %133, %134 : vector<16x32xf32>
    %c1 = arith.constant 1 : index
    %c0_37 = arith.constant 0 : index
    %c0_38 = arith.constant 0 : index
    %136 = vector.load %arg3[%c1, %c0_37, %c0_38] : memref<2x40x192xf32, #tpu.memory_space<vmem>>, vector<1x40x192xf32>
    %137 = vector.shape_cast %136 : vector<1x40x192xf32> to vector<40x192xf32>
    %c1_39 = arith.constant 1 : index
    %c0_40 = arith.constant 0 : index
    %c0_41 = arith.constant 0 : index
    %138 = vector.load %arg4[%c1_39, %c0_40, %c0_41] : memref<2x128x32xf32, #tpu.memory_space<vmem>>, vector<1x128x32xf32>
    %139 = vector.shape_cast %138 : vector<1x128x32xf32> to vector<128x32xf32>
    %140 = vector.extract_strided_slice %137 {offsets = [0, 0], sizes = [32, 32], strides = [1, 1]} : vector<40x192xf32> to vector<32x32xf32>
    %141 = vector.extract_strided_slice %137 {offsets = [0, 32], sizes = [32, 32], strides = [1, 1]} : vector<40x192xf32> to vector<32x32xf32>
    %142 = vector.extract_strided_slice %137 {offsets = [0, 64], sizes = [32, 128], strides = [1, 1]} : vector<40x192xf32> to vector<32x128xf32>
    %143 = vector.extract_strided_slice %137 {offsets = [32, 0], sizes = [1, 32], strides = [1, 1]} : vector<40x192xf32> to vector<1x32xf32>
    %144 = vector.extract_strided_slice %137 {offsets = [33, 0], sizes = [1, 32], strides = [1, 1]} : vector<40x192xf32> to vector<1x32xf32>
    %145 = vector.extract_strided_slice %137 {offsets = [34, 0], sizes = [1, 32], strides = [1, 1]} : vector<40x192xf32> to vector<1x32xf32>
    %146 = vector.extract_strided_slice %137 {offsets = [35, 0], sizes = [1, 128], strides = [1, 1]} : vector<40x192xf32> to vector<1x128xf32>
    %147 = vector.extract_strided_slice %137 {offsets = [36, 0], sizes = [1, 32], strides = [1, 1]} : vector<40x192xf32> to vector<1x32xf32>
    %148 = vector.extract_strided_slice %137 {offsets = [37, 0], sizes = [1, 32], strides = [1, 1]} : vector<40x192xf32> to vector<1x32xf32>
    %149 = vector.extract_strided_slice %137 {offsets = [38, 0], sizes = [1, 32], strides = [1, 1]} : vector<40x192xf32> to vector<1x32xf32>
    %cst_42 = arith.constant 0.000000e+00 : f32
    %150 = vector.broadcast %cst_42 : f32 to vector<16x32xf32>
    %151 = arith.select %19, %135, %150 : vector<16x32xi1>, vector<16x32xf32>
    %cst_43 = arith.constant 0.000000e+00 : f32
    %152 = vector.broadcast %cst_43 : f32 to vector<16x32xf32>
    %153 = arith.select %24, %135, %152 : vector<16x32xi1>, vector<16x32xf32>
    %cst_44 = arith.constant 0.000000e+00 : f32
    %154 = vector.broadcast %cst_44 : f32 to vector<16x32xf32>
    %155 = arith.select %29, %135, %154 : vector<16x32xi1>, vector<16x32xf32>
    %cst_45 = arith.constant 0.000000e+00 : f32
    %156 = vector.broadcast %cst_45 : f32 to vector<16x32xf32>
    %157 = arith.select %34, %135, %156 : vector<16x32xi1>, vector<16x32xf32>
    %158 = tpu.concatenate %151, %153, %155, %157 in 0 : vector<16x32xf32>, vector<16x32xf32>, vector<16x32xf32>, vector<16x32xf32> -> vector<64x32xf32>
    %cst_46 = arith.constant dense<0.000000e+00> : vector<64x32xf32>
    %159 = tpu.matmul %158, %140, %cst_46 {dimension_numbers = #tpu.dot_dimension_numbers<[1], [0], [0], [1], [0, 0, 1, 1], [], []>} : vector<64x32xf32>, vector<32x32xf32>, vector<64x32xf32> -> vector<64x32xf32>
    %cst_47 = arith.constant dense<0.000000e+00> : vector<64x64xf32>
    %160 = tpu.matmul %159, %158, %cst_47 {dimension_numbers = #tpu.dot_dimension_numbers<[1], [1], [0], [0], [0, 0, 1, 0], [], []>} : vector<64x32xf32>, vector<64x32xf32>, vector<64x64xf32> -> vector<64x64xf32>
    %161 = arith.addf %160, %13 : vector<64x64xf32>
    %cst_48 = arith.constant dense<0xFF800000> : vector<64xf32>
    %162 = vector.multi_reduction <maximumf>, %161, %cst_48 [1] : vector<64x64xf32> to vector<64xf32>
    %163 = vector.shape_cast %162 : vector<64xf32> to vector<64x1xf32>
    %164 = vector.broadcast %163 : vector<64x1xf32> to vector<64x64xf32>
    %165 = arith.subf %161, %164 : vector<64x64xf32>
    %166 = math.exp %165 : vector<64x64xf32>
    %cst_49 = arith.constant dense<0.000000e+00> : vector<64xf32>
    %167 = vector.multi_reduction <add>, %166, %cst_49 [1] : vector<64x64xf32> to vector<64xf32>
    %168 = vector.shape_cast %167 : vector<64xf32> to vector<64x1xf32>
    %169 = tpu.reciprocal %168 {approx = true} : vector<64x1xf32> -> vector<64x1xf32>
    %170 = vector.broadcast %169 : vector<64x1xf32> to vector<64x64xf32>
    %171 = arith.mulf %166, %170 : vector<64x64xf32>
    %cst_50 = arith.constant dense<0.000000e+00> : vector<64x32xf32>
    %172 = tpu.matmul %158, %141, %cst_50 {dimension_numbers = #tpu.dot_dimension_numbers<[1], [0], [0], [1], [0, 0, 1, 1], [], []>} : vector<64x32xf32>, vector<32x32xf32>, vector<64x32xf32> -> vector<64x32xf32>
    %cst_51 = arith.constant dense<0.000000e+00> : vector<64x32xf32>
    %173 = tpu.matmul %171, %172, %cst_51 {dimension_numbers = #tpu.dot_dimension_numbers<[1], [0], [0], [1], [0, 0, 1, 1], [], []>} : vector<64x64xf32>, vector<64x32xf32>, vector<64x32xf32> -> vector<64x32xf32>
    %174 = vector.extract_strided_slice %173 {offsets = [0, 0], sizes = [16, 32], strides = [1, 1]} : vector<64x32xf32> to vector<16x32xf32>
    %175 = vector.extract_strided_slice %173 {offsets = [16, 0], sizes = [16, 32], strides = [1, 1]} : vector<64x32xf32> to vector<16x32xf32>
    %176 = arith.addf %174, %175 : vector<16x32xf32>
    %177 = vector.extract_strided_slice %173 {offsets = [32, 0], sizes = [16, 32], strides = [1, 1]} : vector<64x32xf32> to vector<16x32xf32>
    %178 = arith.addf %176, %177 : vector<16x32xf32>
    %179 = vector.extract_strided_slice %173 {offsets = [48, 0], sizes = [16, 32], strides = [1, 1]} : vector<64x32xf32> to vector<16x32xf32>
    %180 = arith.addf %178, %179 : vector<16x32xf32>
    %181 = vector.broadcast %143 : vector<1x32xf32> to vector<16x32xf32>
    %182 = arith.addf %180, %181 : vector<16x32xf32>
    %183 = arith.addf %182, %135 : vector<16x32xf32>
    %cst_52 = arith.constant dense<0.000000e+00> : vector<16xf32>
    %184 = vector.multi_reduction <add>, %183, %cst_52 [1] : vector<16x32xf32> to vector<16xf32>
    %185 = vector.shape_cast %184 : vector<16xf32> to vector<16x1xf32>
    %cst_53 = arith.constant 3.200000e+01 : f32
    %186 = vector.broadcast %cst_53 : f32 to vector<16x1xf32>
    %187 = arith.divf %185, %186 : vector<16x1xf32>
    %188 = vector.broadcast %187 : vector<16x1xf32> to vector<16x32xf32>
    %189 = arith.subf %183, %188 : vector<16x32xf32>
    %190 = arith.mulf %189, %189 : vector<16x32xf32>
    %cst_54 = arith.constant dense<0.000000e+00> : vector<16xf32>
    %191 = vector.multi_reduction <add>, %190, %cst_54 [1] : vector<16x32xf32> to vector<16xf32>
    %192 = vector.shape_cast %191 : vector<16xf32> to vector<16x1xf32>
    %cst_55 = arith.constant 3.200000e+01 : f32
    %193 = vector.broadcast %cst_55 : f32 to vector<16x1xf32>
    %194 = arith.divf %192, %193 : vector<16x1xf32>
    %195 = vector.broadcast %187 : vector<16x1xf32> to vector<16x32xf32>
    %196 = arith.subf %183, %195 : vector<16x32xf32>
    %cst_56 = arith.constant 9.99999974E-6 : f32
    %197 = vector.broadcast %cst_56 : f32 to vector<16x1xf32>
    %198 = arith.addf %194, %197 : vector<16x1xf32>
    %199 = math.rsqrt %198 : vector<16x1xf32>
    %200 = vector.broadcast %199 : vector<16x1xf32> to vector<16x32xf32>
    %201 = arith.mulf %196, %200 : vector<16x32xf32>
    %202 = vector.broadcast %144 : vector<1x32xf32> to vector<16x32xf32>
    %203 = arith.mulf %201, %202 : vector<16x32xf32>
    %204 = vector.broadcast %145 : vector<1x32xf32> to vector<16x32xf32>
    %205 = arith.addf %203, %204 : vector<16x32xf32>
    %cst_57 = arith.constant dense<0.000000e+00> : vector<16x128xf32>
    %206 = tpu.matmul %205, %142, %cst_57 {dimension_numbers = #tpu.dot_dimension_numbers<[1], [0], [0], [1], [0, 0, 1, 1], [], []>} : vector<16x32xf32>, vector<32x128xf32>, vector<16x128xf32> -> vector<16x128xf32>
    %207 = vector.broadcast %146 : vector<1x128xf32> to vector<16x128xf32>
    %208 = arith.addf %206, %207 : vector<16x128xf32>
    %cst_58 = arith.constant 0.000000e+00 : f32
    %209 = vector.broadcast %cst_58 : f32 to vector<16x128xf32>
    %210 = arith.maximumf %208, %209 : vector<16x128xf32>
    %cst_59 = arith.constant dense<0.000000e+00> : vector<16x32xf32>
    %211 = tpu.matmul %210, %139, %cst_59 {dimension_numbers = #tpu.dot_dimension_numbers<[1], [0], [0], [1], [0, 0, 1, 1], [], []>} : vector<16x128xf32>, vector<128x32xf32>, vector<16x32xf32> -> vector<16x32xf32>
    %212 = vector.broadcast %147 : vector<1x32xf32> to vector<16x32xf32>
    %213 = arith.addf %211, %212 : vector<16x32xf32>
    %214 = arith.addf %213, %205 : vector<16x32xf32>
    %cst_60 = arith.constant dense<0.000000e+00> : vector<16xf32>
    %215 = vector.multi_reduction <add>, %214, %cst_60 [1] : vector<16x32xf32> to vector<16xf32>
    %216 = vector.shape_cast %215 : vector<16xf32> to vector<16x1xf32>
    %cst_61 = arith.constant 3.200000e+01 : f32
    %217 = vector.broadcast %cst_61 : f32 to vector<16x1xf32>
    %218 = arith.divf %216, %217 : vector<16x1xf32>
    %219 = vector.broadcast %218 : vector<16x1xf32> to vector<16x32xf32>
    %220 = arith.subf %214, %219 : vector<16x32xf32>
    %221 = arith.mulf %220, %220 : vector<16x32xf32>
    %cst_62 = arith.constant dense<0.000000e+00> : vector<16xf32>
    %222 = vector.multi_reduction <add>, %221, %cst_62 [1] : vector<16x32xf32> to vector<16xf32>
    %223 = vector.shape_cast %222 : vector<16xf32> to vector<16x1xf32>
    %cst_63 = arith.constant 3.200000e+01 : f32
    %224 = vector.broadcast %cst_63 : f32 to vector<16x1xf32>
    %225 = arith.divf %223, %224 : vector<16x1xf32>
    %226 = vector.broadcast %218 : vector<16x1xf32> to vector<16x32xf32>
    %227 = arith.subf %214, %226 : vector<16x32xf32>
    %cst_64 = arith.constant 9.99999974E-6 : f32
    %228 = vector.broadcast %cst_64 : f32 to vector<16x1xf32>
    %229 = arith.addf %225, %228 : vector<16x1xf32>
    %230 = math.rsqrt %229 : vector<16x1xf32>
    %231 = vector.broadcast %230 : vector<16x1xf32> to vector<16x32xf32>
    %232 = arith.mulf %227, %231 : vector<16x32xf32>
    %233 = vector.broadcast %148 : vector<1x32xf32> to vector<16x32xf32>
    %234 = arith.mulf %232, %233 : vector<16x32xf32>
    %235 = vector.broadcast %149 : vector<1x32xf32> to vector<16x32xf32>
    %236 = arith.addf %234, %235 : vector<16x32xf32>
    %c0_65 = arith.constant 0 : index
    %c0_66 = arith.constant 0 : index
    %237 = vector.load %arg5[%c0_65, %c0_66] : memref<16x32xf32, #tpu.memory_space<vmem>>, vector<16x32xf32>
    tpu.vector_store %arg5[%c0_65, %c0_66], %236 {strides = array<i32>} : memref<16x32xf32, #tpu.memory_space<vmem>>, vector<16x32xf32>,
    return
  }
}

</mosaic_0001>

<llo_original>
// kernel: encoder_forward.1
$region0: #{encoder_forward.1}
  #allocation0 [shape = 'u32[]', space=smem, size = 0x4, offset = 0x4, fixed_abs, tag = 'smem constant byte address 0x4 - core index']
  #allocation1 [shape = 'u32[144,128]{1,0:T(1,128)}', space=vmem, size = 0x12000, scoped, tag = 'internal scratch']
  %s0 = inlined_call_operand.vmem [shape: s32[16,2], index: 0, kind: input, shape index: {}]
  %s1 = inlined_call_operand.vmem [shape: f32[144,32], index: 1, kind: input, shape index: {}]
  %s2 = inlined_call_operand.vmem [shape: f32[64,64], index: 2, kind: input, shape index: {}]
  %s3 = inlined_call_operand.vmem [shape: f32[2,40,192], index: 3, kind: input, shape index: {}]
  %s4 = inlined_call_operand.vmem [shape: f32[2,128,32], index: 4, kind: input, shape index: {}]
  %s5 = inlined_call_operand.hbm [shape: f32[16,32], index: 5, kind: output, shape index: {}]
  %s6 = sld [smem:[#allocation0]]
  $region30: #{encoder_forward.1} parent=0
    _
  %s8 = ssub.s32 1, %s6
  %s9 = scalar_select 0, %s8, %s6
  $region1: #{encoder_forward.1} parent=0
    #allocation2 [shape = 'u8[8192]{0}', space=vmem, size = 0x2000, scoped, tag = 'output window, operand 0, single buffered']
    #allocation3 [shape = 's32[1]{0}', space=sflag, size = 0x4, scoped, tag = 'scoped memory for encoder_forward.1']
    %10 = vsyncpa [#allocation3], 0
    // Predicated region
    $region2: #{encoder_forward.1} parent=1 // pred_check
      _
    $region3: #{encoder_forward.1} parent=1 // pred_check_branch
      %12 = sbr.rel (0) target = $region5
    $region4: #{encoder_forward.1} parent=1 // pred_region
      _
    $region5: #{encoder_forward.1} parent=1 // pred_fallthru
      _
    // Predicated region
    $region6: #{encoder_forward.1} parent=1 // pred_check
      _
    $region7: #{encoder_forward.1} parent=1 // pred_check_branch
      %14 = sbr.rel (0) target = $region9
    $region8: #{encoder_forward.1} parent=1 // pred_region
      _
    $region9: #{encoder_forward.1} parent=1 // pred_fallthru
      _
    // Predicated region
    $region10: #{encoder_forward.1} parent=1 // pred_check
      _
    $region11: #{encoder_forward.1} parent=1 // pred_check_branch
      %16 = sbr.rel (0) target = $region13
    $region12: #{encoder_forward.1} parent=1 // pred_region
      _
    $region13: #{encoder_forward.1} parent=1 // pred_fallthru
      _
    // Predicated region
    $region14: #{encoder_forward.1} parent=1 // pred_check
      _
    $region15: #{encoder_forward.1} parent=1 // pred_check_branch
      %18 = sbr.rel (0) target = $region17
    $region16: #{encoder_forward.1} parent=1 // pred_region
      _
    $region17: #{encoder_forward.1} parent=1 // pred_fallthru
      _
    // Predicated region
    $region18: #{encoder_forward.1} parent=1 // pred_check
      _
    $region19: #{encoder_forward.1} parent=1 // pred_check_branch
      %20 = sbr.rel (0) target = $region21
    $region20: #{encoder_forward.1} parent=1 // pred_region
      _
    $region21: #{encoder_forward.1} parent=1 // pred_fallthru
      _
    %v21 = vld [vmem:[%s0] sm:$0xff]
    %v22 = vld [vmem:[%s0 + $0x8] sm:$0xff]
    %v23 = vlaneseq
    %v24 = vand.u32 %v23, 127
    %v25 = vadd.s32 %v24, 128
    %26 = vset.pattern.permute.xlu0 0
    %27 = vperm.xlu0 %26, %v21
    %v28 = vpop.permute.xlu0 %27
    %29 = vset.pattern.permute.xlu0 0
    %30 = vperm.xlu0 %29, %v22
    %v31 = vpop.permute.xlu0 %30
    %vm32 = vcmp.eq.s32.totalorder %v24, %v28
    %vm33 = vcmp.eq.s32.totalorder %v25, %v28
    %vm34 = vcmp.eq.s32.totalorder %v24, %v31
    %vm35 = vcmp.eq.s32.totalorder %v25, %v31
    %36 = vset.pattern.permute.xlu0 1
    %37 = vperm.xlu0 %36, %v21
    %v38 = vpop.permute.xlu0 %37
    %39 = vset.pattern.permute.xlu0 1
    %40 = vperm.xlu0 %39, %v22
    %v41 = vpop.permute.xlu0 %40
    %vm42 = vcmp.eq.s32.totalorder %v24, %v38
    %vm43 = vcmp.eq.s32.totalorder %v25, %v38
    %vm44 = vcmp.eq.s32.totalorder %v24, %v41
    %vm45 = vcmp.eq.s32.totalorder %v25, %v41
    %vm46 = vmor %vm32, %vm42
    %vm47 = vmor %vm33, %vm43
    %vm48 = vmor %vm34, %vm44
    %vm49 = vmor %vm35, %vm45
    %v50 = vsel %vm46, 1, 0
    %v51 = vsel %vm47, 1, 0
    %v52 = vsel %vm48, 1, 0
    %v53 = vsel %vm49, 1, 0
    %v54 = vcvt.s32.f32 %v50
    %v55 = vcvt.s32.f32 %v51
    %v56 = vcvt.s32.f32 %v52
    %v57 = vcvt.s32.f32 %v53
    %v58 = vld [vmem:[%s1] sm:$0xff]
    %v59 = vld [vmem:[%s1 + $0x8] sm:$0xff]
    %v60 = vld [vmem:[%s1 + $0x10] sm:$0xff]
    %v61 = vld [vmem:[%s1 + $0x18] sm:$0xff]
    %v62 = vld [vmem:[%s1 + $0x20] sm:$0xff]
    %v63 = vld [vmem:[%s1 + $0x28] sm:$0xff]
    %v64 = vld [vmem:[%s1 + $0x30] sm:$0xff]
    %v65 = vld [vmem:[%s1 + $0x38] sm:$0xff]
    %v66 = vld [vmem:[%s1 + $0x40] sm:$0xff]
    %v67 = vld [vmem:[%s1 + $0x48] sm:$0xff]
    %v68 = vld [vmem:[%s1 + $0x50] sm:$0xff]
    %v69 = vld [vmem:[%s1 + $0x58] sm:$0xff]
    %v70 = vld [vmem:[%s1 + $0x60] sm:$0xff]
    %v71 = vld [vmem:[%s1 + $0x68] sm:$0xff]
    %v72 = vld [vmem:[%s1 + $0x70] sm:$0xff]
    %v73 = vld [vmem:[%s1 + $0x78] sm:$0xff]
    %v74 = vld [vmem:[%s1 + $0x80] sm:$0xff]
    %v75 = vld [vmem:[%s1 + $0x88] sm:$0xff]
    %vm76 = vcmask 130048
    %v78 = vsel %vm76, %v55, 0
    %v81 = vsel %vm76, %v57, 0
    %83 = vmatprep.subr.mxu0 0.0
    %84 = vmatpush1.msra.mxu0 %v58
    %85 = vmatprep.subr.mxu0 0.0
    %86 = vmatpush1.msra.mxu0 %v59
    %87 = vmatprep.subr.mxu0 0.0
    %88 = vmatpush1.msra.mxu0 %v60
    %89 = vmatprep.subr.mxu0 0.0
    %90 = vmatpush1.msra.mxu0 %v61
    %91 = vmatprep.subr.mxu0 0.0
    %92 = vmatpush1.msra.mxu0 %v62
    %93 = vmatprep.subr.mxu0 0.0
    %94 = vmatpush1.msra.mxu0 %v63
    %95 = vmatprep.subr.mxu0 0.0
    %96 = vmatpush1.msra.mxu0 %v64
    %97 = vmatprep.subr.mxu0 0.0
    %98 = vmatpush1.msra.mxu0 %v65
    %99 = vmatprep.subr.mxu0 0.0
    %100 = vmatpush1.msra.mxu0 %v66
    %101 = vmatprep.subr.mxu0 0.0
    %102 = vmatpush1.msra.mxu0 %v67
    %103 = vmatprep.subr.mxu0 0.0
    %104 = vmatpush1.msra.mxu0 %v68
    %105 = vmatprep.subr.mxu0 0.0
    %106 = vmatpush1.msra.mxu0 %v69
    %107 = vmatprep.subr.mxu0 0.0
    %108 = vmatpush1.msra.mxu0 %v70
    %109 = vmatprep.subr.mxu0 0.0
    %110 = vmatpush1.msra.mxu0 %v71
    %111 = vmatprep.subr.mxu0 0.0
    %112 = vmatpush1.msra.mxu0 %v72
    %113 = vmatprep.subr.mxu0 0.0
    %114 = vmatpush1.msra.mxu0 %v73
    %115 = vmatprep.subr.mxu0 0.0
    %116 = vmatpush1.msra.mxu0 %v74
    %117 = vmatprep.subr.mxu0 0.0
    %118 = vmatpush1.msra.mxu0 %v75
    %119 = vmatprep.subr.mxu0 0.0
    %120 = vmatpush1.msra.mxu0 0.0
    %121 = vmatprep.subr.mxu0 0.0
    %122 = vmatpush1.msra.mxu0 0.0
    %123 = vmatprep.subr.mxu0 0.0
    %124 = vmatpush1.msra.mxu0 0.0
    %125 = vmatprep.subr.mxu0 0.0
    %126 = vmatpush1.msra.mxu0 0.0
    %127 = vmatprep.subr.mxu0 0.0
    %128 = vmatpush1.msra.mxu0 0.0
    %129 = vmatprep.subr.mxu0 0.0
    %130 = vmatpush1.msra.mxu0 0.0
    %131 = vmatprep.subr.mxu0 0.0
    %132 = vmatpush1.msra.mxu0 0.0
    %133 = vmatprep.subr.mxu0 0.0
    %134 = vmatpush1.msra.mxu0 0.0
    %135 = vmatprep.subr.mxu0 0.0
    %136 = vmatpush1.msra.mxu0 0.0
    %137 = vmatprep.subr.mxu0 0.0
    %138 = vmatpush1.msra.mxu0 0.0
    %139 = vmatprep.subr.mxu0 0.0
    %140 = vmatpush1.msra.mxu0 0.0
    %141 = vmatprep.subr.mxu0 0.0
    %142 = vmatpush1.msra.mxu0 0.0
    %143 = vmatprep.subr.mxu0 0.0
    %144 = vmatpush1.msra.mxu0 0.0
    %145 = vmatprep.subr.mxu0 0.0
    %146 = vmatpush1.msra.mxu0 0.0
    %147 = vmatprep.mubr.f32.mxu0 %v78
    %148 = vmatmul.mubr.f32.gmra.mrb[0].mxu0 %v54
    %v149 = vpop.f32.mrb[0].mxu0
    %v150 = vadd.f32 0.0, %v149
    %v151 = vpop.f32.mrb[0].mxu0
    %152 = vmatprep.mubr.f32.mxu0 %v81
    %153 = vmatmul.mubr.f32.gmra.mrb[0].mxu0 %v56
    %v154 = vpop.f32.mrb[0].mxu0
    %v155 = vadd.f32 0.0, %v154
    %v156 = vpop.f32.mrb[0].mxu0
    %157 = vdwg.mxu0
    %v158 = vld [vmem:[%s2] sm:$0xff]
    %v159 = vld [vmem:[%s2 + $0x8] sm:$0xff]
    %v160 = vld [vmem:[%s2 + $0x10] sm:$0xff]
    %v161 = vld [vmem:[%s2 + $0x18] sm:$0xff]
    %v162 = vld [vmem:[%s2 + $0x20] sm:$0xff]
    %v163 = vld [vmem:[%s2 + $0x28] sm:$0xff]
    %v164 = vld [vmem:[%s2 + $0x30] sm:$0xff]
    %v165 = vld [vmem:[%s2 + $0x38] sm:$0xff]
    %vm166 = vcmp.ge.s32.totalorder %v24, 0
    %vm167 = vcmp.lt.s32.totalorder %v24, 8
    %vm168 = vmand %vm166, %vm167
    %vm169 = vcmp.ge.s32.totalorder %v24, 8
    %vm170 = vcmp.lt.s32.totalorder %v24, 16
    %vm171 = vmand %vm169, %vm170
    %vm172 = vcmp.ge.s32.totalorder %v24, 16
    %vm173 = vcmp.lt.s32.totalorder %v24, 24
    %vm174 = vmand %vm172, %vm173
    %vm175 = vcmp.ge.s32.totalorder %v24, 24
    %vm176 = vcmp.lt.s32.totalorder %v24, 32
    %vm177 = vmand %vm175, %vm176
    %v178 = vld [vmem:[%s3] sm:$0xff]
    %v179 = vld [vmem:[%s3 + $0x8] sm:$0xff]
    %v180 = vld [vmem:[%s3 + $0x10] sm:$0xff]
    %v181 = vld [vmem:[%s3 + $0x18] sm:$0xff]
    %v182 = vld [vmem:[%s3 + $0x20] sm:$0xff]
    %v183 = vld [vmem:[%s3 + $0x28] sm:$0xff]
    %v184 = vld [vmem:[%s3 + $0x30] sm:$0xff]
    %v185 = vld [vmem:[%s3 + $0x38] sm:$0xff]
    %v186 = vld [vmem:[%s3 + $0x40] sm:$0xff]
    %v187 = vld [vmem:[%s4] sm:$0xff]
    %v188 = vld [vmem:[%s4 + $0x8] sm:$0xff]
    %v189 = vld [vmem:[%s4 + $0x10] sm:$0xff]
    %v190 = vld [vmem:[%s4 + $0x18] sm:$0xff]
    %v191 = vld [vmem:[%s4 + $0x20] sm:$0xff]
    %v192 = vld [vmem:[%s4 + $0x28] sm:$0xff]
    %v193 = vld [vmem:[%s4 + $0x30] sm:$0xff]
    %v194 = vld [vmem:[%s4 + $0x38] sm:$0xff]
    %v195 = vld [vmem:[%s4 + $0x40] sm:$0xff]
    %v196 = vld [vmem:[%s4 + $0x48] sm:$0xff]
    %v197 = vld [vmem:[%s4 + $0x50] sm:$0xff]
    %v198 = vld [vmem:[%s4 + $0x58] sm:$0xff]
    %v199 = vld [vmem:[%s4 + $0x60] sm:$0xff]
    %v200 = vld [vmem:[%s4 + $0x68] sm:$0xff]
    %v201 = vld [vmem:[%s4 + $0x70] sm:$0xff]
    %v202 = vld [vmem:[%s4 + $0x78] sm:$0xff]
    %v203 = vsel %vm168, %v150, 0.0
    %v204 = vsel %vm168, %v155, 0.0
    %v205 = vsel %vm171, %v150, 0.0
    %v206 = vsel %vm171, %v155, 0.0
    %v207 = vsel %vm174, %v150, 0.0
    %v208 = vsel %vm174, %v155, 0.0
    %v209 = vsel %vm177, %v150, 0.0
    %v210 = vsel %vm177, %v155, 0.0
    %vm211 = vcmask 261120
    %v213 = vsel %vm211, %v203, 0
    %v216 = vsel %vm211, %v204, 0
    %v219 = vsel %vm211, %v205, 0
    %v222 = vsel %vm211, %v206, 0
    %v225 = vsel %vm211, %v207, 0
    %v228 = vsel %vm211, %v208, 0
    %v231 = vsel %vm211, %v209, 0
    %v234 = vsel %vm211, %v210, 0
    %236 = vmatprep.subr.mxu0 0.0
    %237 = vmatpush1.msra.mxu0 %v178
    %238 = vmatprep.subr.mxu0 0.0
    %239 = vmatpush1.msra.mxu0 %v180
    %240 = vmatprep.subr.mxu0 0.0
    %241 = vmatpush1.msra.mxu0 %v182
    %242 = vmatprep.subr.mxu0 0.0
    %243 = vmatpush1.msra.mxu0 %v184
    %244 = vmatprep.subr.mxu0 0.0
    %245 = vmatpush1.msra.mxu0 0.0
    %246 = vmatprep.subr.mxu0 0.0
    %247 = vmatpush1.msra.mxu0 0.0
    %248 = vmatprep.subr.mxu0 0.0
    %249 = vmatpush1.msra.mxu0 0.0
    %250 = vmatprep.subr.mxu0 0.0
    %251 = vmatpush1.msra.mxu0 0.0
    %252 = vmatprep.subr.mxu0 0.0
    %253 = vmatpush1.msra.mxu0 0.0
    %254 = vmatprep.subr.mxu0 0.0
    %255 = vmatpush1.msra.mxu0 0.0
    %256 = vmatprep.subr.mxu0 0.0
    %257 = vmatpush1.msra.mxu0 0.0
    %258 = vmatprep.subr.mxu0 0.0
    %259 = vmatpush1.msra.mxu0 0.0
    %260 = vmatprep.subr.mxu0 0.0
    %261 = vmatpush1.msra.mxu0 0.0
    %262 = vmatprep.subr.mxu0 0.0
    %263 = vmatpush1.msra.mxu0 0.0
    %264 = vmatprep.subr.mxu0 0.0
    %265 = vmatpush1.msra.mxu0 0.0
    %266 = vmatprep.subr.mxu0 0.0
    %267 = vmatpush1.msra.mxu0 0.0
    %268 = vmatprep.subr.mxu0 0.0
    %269 = vmatpush1.msra.mxu0 0.0
    %270 = vmatprep.subr.mxu0 0.0
    %271 = vmatpush1.msra.mxu0 0.0
    %272 = vmatprep.subr.mxu0 0.0
    %273 = vmatpush1.msra.mxu0 0.0
    %274 = vmatprep.subr.mxu0 0.0
    %275 = vmatpush1.msra.mxu0 0.0
    %276 = vmatprep.subr.mxu0 0.0
    %277 = vmatpush1.msra.mxu0 0.0
    %278 = vmatprep.subr.mxu0 0.0
    %279 = vmatpush1.msra.mxu0 0.0
    %280 = vmatprep.subr.mxu0 0.0
    %281 = vmatpush1.msra.mxu0 0.0
    %282 = vmatprep.subr.mxu0 0.0
    %283 = vmatpush1.msra.mxu0 0.0
    %284 = vmatprep.subr.mxu0 0.0
    %285 = vmatpush1.msra.mxu0 0.0
    %286 = vmatprep.subr.mxu0 0.0
    %287 = vmatpush1.msra.mxu0 0.0
    %288 = vmatprep.subr.mxu0 0.0
    %289 = vmatpush1.msra.mxu0 0.0
    %290 = vmatprep.subr.mxu0 0.0
    %291 = vmatpush1.msra.mxu0 0.0
    %292 = vmatprep.subr.mxu0 0.0
    %293 = vmatpush1.msra.mxu0 0.0
    %294 = vmatprep.subr.mxu0 0.0
    %295 = vmatpush1.msra.mxu0 0.0
    %296 = vmatprep.subr.mxu0 0.0
    %297 = vmatpush1.msra.mxu0 0.0
    %298 = vmatprep.subr.mxu0 0.0
    %299 = vmatpush1.msra.mxu0 0.0
    %300 = vmatprep.mubr.f32.mxu0 0.0
    %301 = vmatmul.mubr.f32.gmra.mrb[0].mxu0 %v213
    %v302 = vpop.f32.mrb[0].mxu0
    %v303 = vadd.f32 0.0, %v302
    %v304 = vpop.f32.mrb[0].mxu0
    %305 = vmatprep.mubr.f32.mxu0 0.0
    %306 = vmatmul.mubr.f32.gmra.mrb[0].mxu0 %v216
    %v307 = vpop.f32.mrb[0].mxu0
    %v308 = vadd.f32 0.0, %v307
    %v309 = vpop.f32.mrb[0].mxu0
    %310 = vmatprep.mubr.f32.mxu0 0.0
    %311 = vmatmul.mubr.f32.gmra.mrb[0].mxu0 %v219
    %v312 = vpop.f32.mrb[0].mxu0
    %v313 = vadd.f32 0.0, %v312
    %v314 = vpop.f32.mrb[0].mxu0
    %315 = vmatprep.mubr.f32.mxu0 0.0
    %316 = vmatmul.mubr.f32.gmra.mrb[0].mxu0 %v222
    %v317 = vpop.f32.mrb[0].mxu0
    %v318 = vadd.f32 0.0, %v317
    %v319 = vpop.f32.mrb[0].mxu0
    %320 = vmatprep.mubr.f32.mxu0 0.0
    %321 = vmatmul.mubr.f32.gmra.mrb[0].mxu0 %v225
    %v322 = vpop.f32.mrb[0].mxu0
    %v323 = vadd.f32 0.0, %v322
    %v324 = vpop.f32.mrb[0].mxu0
    %325 = vmatprep.mubr.f32.mxu0 0.0
    %326 = vmatmul.mubr.f32.gmra.mrb[0].mxu0 %v228
    %v327 = vpop.f32.mrb[0].mxu0
    %v328 = vadd.f32 0.0, %v327
    %v329 = vpop.f32.mrb[0].mxu0
    %330 = vmatprep.mubr.f32.mxu0 0.0
    %331 = vmatmul.mubr.f32.gmra.mrb[0].mxu0 %v231
    %v332 = vpop.f32.mrb[0].mxu0
    %v333 = vadd.f32 0.0, %v332
    %v334 = vpop.f32.mrb[0].mxu0
    %335 = vmatprep.mubr.f32.mxu0 0.0
    %336 = vmatmul.mubr.f32.gmra.mrb[0].mxu0 %v234
    %v337 = vpop.f32.mrb[0].mxu0
    %v338 = vadd.f32 0.0, %v337
    %v339 = vpop.f32.mrb[0].mxu0
    %340 = vdwg.mxu0
    %v342 = vsel %vm211, %v303, 0
    %v345 = vsel %vm211, %v308, 0
    %v348 = vsel %vm211, %v313, 0
    %v351 = vsel %vm211, %v318, 0
    %v354 = vsel %vm211, %v323, 0
    %v357 = vsel %vm211, %v328, 0
    %v360 = vsel %vm211, %v333, 0
    %v363 = vsel %vm211, %v338, 0
    %365 = vmatprep.subr.mxu0 0.0
    %366 = vmatpush1.xpose.msra.mxu0 %v213
    %367 = vmatprep.subr.mxu0 0.0
    %368 = vmatpush1.xpose.msra.mxu0 %v216
    %369 = vmatprep.subr.mxu0 0.0
    %370 = vmatpush1.xpose.msra.mxu0 %v219
    %371 = vmatprep.subr.mxu0 0.0
    %372 = vmatpush1.xpose.msra.mxu0 %v222
    %373 = vmatprep.subr.mxu0 0.0
    %374 = vmatpush1.xpose.msra.mxu0 %v225
    %375 = vmatprep.subr.mxu0 0.0
    %376 = vmatpush1.xpose.msra.mxu0 %v228
    %377 = vmatprep.subr.mxu0 0.0
    %378 = vmatpush1.xpose.msra.mxu0 %v231
    %379 = vmatprep.subr.mxu0 0.0
    %380 = vmatpush1.xpose.msra.mxu0 %v234
    %381 = vmatprep.subr.mxu0 0.0
    %382 = vmatpush1.xpose.msra.mxu0 0.0
    %383 = vmatprep.subr.mxu0 0.0
    %384 = vmatpush1.xpose.msra.mxu0 0.0
    %385 = vmatprep.subr.mxu0 0.0
    %386 = vmatpush1.xpose.msra.mxu0 0.0
    %387 = vmatprep.subr.mxu0 0.0
    %388 = vmatpush1.xpose.msra.mxu0 0.0
    %389 = vmatprep.subr.mxu0 0.0
    %390 = vmatpush1.xpose.msra.mxu0 0.0
    %391 = vmatprep.subr.mxu0 0.0
    %392 = vmatpush1.xpose.msra.mxu0 0.0
    %393 = vmatprep.subr.mxu0 0.0
    %394 = vmatpush1.xpose.msra.mxu0 0.0
    %395 = vmatprep.subr.mxu0 0.0
    %396 = vmatpush1.xpose.msra.mxu0 0.0
    %397 = vmatprep.subr.mxu0 0.0
    %398 = vmatpush1.xpose.msra.mxu0 0.0
    %399 = vmatprep.subr.mxu0 0.0
    %400 = vmatpush1.xpose.msra.mxu0 0.0
    %401 = vmatprep.subr.mxu0 0.0
    %402 = vmatpush1.xpose.msra.mxu0 0.0
    %403 = vmatprep.subr.mxu0 0.0
    %404 = vmatpush1.xpose.msra.mxu0 0.0
    %405 = vmatprep.subr.mxu0 0.0
    %406 = vmatpush1.xpose.msra.mxu0 0.0
    %407 = vmatprep.subr.mxu0 0.0
    %408 = vmatpush1.xpose.msra.mxu0 0.0
    %409 = vmatprep.subr.mxu0 0.0
    %410 = vmatpush1.xpose.msra.mxu0 0.0
    %411 = vmatprep.subr.mxu0 0.0
    %412 = vmatpush1.xpose.msra.mxu0 0.0
    %413 = vmatprep.subr.mxu0 0.0
    %414 = vmatpush1.xpose.msra.mxu0 0.0
    %415 = vmatprep.subr.mxu0 0.0
    %416 = vmatpush1.xpose.msra.mxu0 0.0
    %417 = vmatprep.subr.mxu0 0.0
    %418 = vmatpush1.xpose.msra.mxu0 0.0
    %419 = vmatprep.subr.mxu0 0.0
    %420 = vmatpush1.xpose.msra.mxu0 0.0
    %421 = vmatprep.subr.mxu0 0.0
    %422 = vmatpush1.xpose.msra.mxu0 0.0
    %423 = vmatprep.subr.mxu0 0.0
    %424 = vmatpush1.xpose.msra.mxu0 0.0
    %425 = vmatprep.subr.mxu0 0.0
    %426 = vmatpush1.xpose.msra.mxu0 0.0
    %427 = vmatprep.subr.mxu0 0.0
    %428 = vmatpush1.xpose.msra.mxu0 0.0
    %429 = vmatprep.mubr.f32.mxu0 0.0
    %430 = vmatmul.mubr.f32.gmra.mrb[0].mxu0 %v342
    %v431 = vpop.f32.mrb[0].mxu0
    %v432 = vadd.f32 %v158, %v431
    %v433 = vpop.f32.mrb[0].mxu0
    %434 = vmatprep.mubr.f32.mxu0 0.0
    %435 = vmatmul.mubr.f32.gmra.mrb[0].mxu0 %v345
    %v436 = vpop.f32.mrb[0].mxu0
    %v437 = vadd.f32 %v159, %v436
    %v438 = vpop.f32.mrb[0].mxu0
    %439 = vmatprep.mubr.f32.mxu0 0.0
    %440 = vmatmul.mubr.f32.gmra.mrb[0].mxu0 %v348
    %v441 = vpop.f32.mrb[0].mxu0
    %v442 = vadd.f32 %v160, %v441
    %v443 = vpop.f32.mrb[0].mxu0
    %444 = vmatprep.mubr.f32.mxu0 0.0
    %445 = vmatmul.mubr.f32.gmra.mrb[0].mxu0 %v351
    %v446 = vpop.f32.mrb[0].mxu0
    %v447 = vadd.f32 %v161, %v446
    %v448 = vpop.f32.mrb[0].mxu0
    %449 = vmatprep.mubr.f32.mxu0 0.0
    %450 = vmatmul.mubr.f32.gmra.mrb[0].mxu0 %v354
    %v451 = vpop.f32.mrb[0].mxu0
    %v452 = vadd.f32 %v162, %v451
    %v453 = vpop.f32.mrb[0].mxu0
    %454 = vmatprep.mubr.f32.mxu0 0.0
    %455 = vmatmul.mubr.f32.gmra.mrb[0].mxu0 %v357
    %v456 = vpop.f32.mrb[0].mxu0
    %v457 = vadd.f32 %v163, %v456
    %v458 = vpop.f32.mrb[0].mxu0
    %459 = vmatprep.mubr.f32.mxu0 0.0
    %460 = vmatmul.mubr.f32.gmra.mrb[0].mxu0 %v360
    %v461 = vpop.f32.mrb[0].mxu0
    %v462 = vadd.f32 %v164, %v461
    %v463 = vpop.f32.mrb[0].mxu0
    %464 = vmatprep.mubr.f32.mxu0 0.0
    %465 = vmatmul.mubr.f32.gmra.mrb[0].mxu0 %v363
    %v466 = vpop.f32.mrb[0].mxu0
    %v467 = vadd.f32 %v165, %v466
    %v468 = vpop.f32.mrb[0].mxu0
    %469 = vdwg.mxu0
    %vm470 = vcmask 523264
    %v471 = vsel %vm470, %v432, -inf
    %472 = vmax.xlane.f32.xlu0 %v471
    %v473 = vpop.xlane.xlu0 %472
    %v474 = vsel %vm470, %v437, -inf
    %475 = vmax.xlane.f32.xlu0 %v474
    %v476 = vpop.xlane.xlu0 %475
    %v477 = vsel %vm470, %v442, -inf
    %478 = vmax.xlane.f32.xlu0 %v477
    %v479 = vpop.xlane.xlu0 %478
    %v480 = vsel %vm470, %v447, -inf
    %481 = vmax.xlane.f32.xlu0 %v480
    %v482 = vpop.xlane.xlu0 %481
    %v483 = vsel %vm470, %v452, -inf
    %484 = vmax.xlane.f32.xlu0 %v483
    %v485 = vpop.xlane.xlu0 %484
    %v486 = vsel %vm470, %v457, -inf
    %487 = vmax.xlane.f32.xlu0 %v486
    %v488 = vpop.xlane.xlu0 %487
    %v489 = vsel %vm470, %v462, -inf
    %490 = vmax.xlane.f32.xlu0 %v489
    %v491 = vpop.xlane.xlu0 %490
    %v492 = vsel %vm470, %v467, -inf
    %493 = vmax.xlane.f32.xlu0 %v492
    %v494 = vpop.xlane.xlu0 %493
    %v495 = vsub.f32 %v432, %v473
    %v496 = vsub.f32 %v437, %v476
    %v497 = vsub.f32 %v442, %v479
    %v498 = vsub.f32 %v447, %v482
    %v499 = vsub.f32 %v452, %v485
    %v500 = vsub.f32 %v457, %v488
    %v501 = vsub.f32 %v462, %v491
    %v502 = vsub.f32 %v467, %v494
    %v503 = vmul.f32 %v495, 1.442695
    %v504 = vpow.pop %v503
    %v505 = vmul.f32 %v496, 1.442695
    %v506 = vpow.pop %v505
    %v507 = vmul.f32 %v497, 1.442695
    %v508 = vpow.pop %v507
    %v509 = vmul.f32 %v498, 1.442695
    %v510 = vpow.pop %v509
    %v511 = vmul.f32 %v499, 1.442695
    %v512 = vpow.pop %v511
    %v513 = vmul.f32 %v500, 1.442695
    %v514 = vpow.pop %v513
    %v515 = vmul.f32 %v501, 1.442695
    %v516 = vpow.pop %v515
    %v517 = vmul.f32 %v502, 1.442695
    %v518 = vpow.pop %v517
    %v519 = vsel %vm470, %v504, 0.0
    %520 = vadd.xlane.f32.xlu0 %v519
    %v521 = vpop.xlane.xlu0 %520
    %v522 = vsel %vm470, %v506, 0.0
    %523 = vadd.xlane.f32.xlu0 %v522
    %v524 = vpop.xlane.xlu0 %523
    %v525 = vsel %vm470, %v508, 0.0
    %526 = vadd.xlane.f32.xlu0 %v525
    %v527 = vpop.xlane.xlu0 %526
    %v528 = vsel %vm470, %v510, 0.0
    %529 = vadd.xlane.f32.xlu0 %v528
    %v530 = vpop.xlane.xlu0 %529
    %v531 = vsel %vm470, %v512, 0.0
    %532 = vadd.xlane.f32.xlu0 %v531
    %v533 = vpop.xlane.xlu0 %532
    %v534 = vsel %vm470, %v514, 0.0
    %535 = vadd.xlane.f32.xlu0 %v534
    %v536 = vpop.xlane.xlu0 %535
    %v537 = vsel %vm470, %v516, 0.0
    %538 = vadd.xlane.f32.xlu0 %v537
    %v539 = vpop.xlane.xlu0 %538
    %v540 = vsel %vm470, %v518, 0.0
    %541 = vadd.xlane.f32.xlu0 %v540
    %v542 = vpop.xlane.xlu0 %541
    %v543 = vrcp.pop %v521
    %v544 = vrcp.pop %v524
    %v545 = vrcp.pop %v527
    %v546 = vrcp.pop %v530
    %v547 = vrcp.pop %v533
    %v548 = vrcp.pop %v536
    %v549 = vrcp.pop %v539
    %v550 = vrcp.pop %v542
    %v551 = vmul.f32 %v504, %v543
    %v552 = vmul.f32 %v506, %v544
    %v553 = vmul.f32 %v508, %v545
    %v554 = vmul.f32 %v510, %v546
    %v555 = vmul.f32 %v512, %v547
    %v556 = vmul.f32 %v514, %v548
    %v557 = vmul.f32 %v516, %v549
    %v558 = vmul.f32 %v518, %v550
    %563 = vrot.lane.b32.xlu0 %v178, 96
    %v564 = vpop.permute.xlu0 %563
    %565 = vrot.lane.b32.xlu0 %v180, 96
    %v566 = vpop.permute.xlu0 %565
    %567 = vrot.lane.b32.xlu0 %v182, 96
    %v568 = vpop.permute.xlu0 %567
    %569 = vrot.lane.b32.xlu0 %v184, 96
    %v570 = vpop.permute.xlu0 %569
    %575 = vmatprep.subr.mxu0 0.0
    %576 = vmatpush1.msra.mxu0 %v564
    %577 = vmatprep.subr.mxu0 0.0
    %578 = vmatpush1.msra.mxu0 %v566
    %579 = vmatprep.subr.mxu0 0.0
    %580 = vmatpush1.msra.mxu0 %v568
    %581 = vmatprep.subr.mxu0 0.0
    %582 = vmatpush1.msra.mxu0 %v570
    %583 = vmatprep.subr.mxu0 0.0
    %584 = vmatpush1.msra.mxu0 0.0
    %585 = vmatprep.subr.mxu0 0.0
    %586 = vmatpush1.msra.mxu0 0.0
    %587 = vmatprep.subr.mxu0 0.0
    %588 = vmatpush1.msra.mxu0 0.0
    %589 = vmatprep.subr.mxu0 0.0
    %590 = vmatpush1.msra.mxu0 0.0
    %591 = vmatprep.subr.mxu0 0.0
    %592 = vmatpush1.msra.mxu0 0.0
    %593 = vmatprep.subr.mxu0 0.0
    %594 = vmatpush1.msra.mxu0 0.0
    %595 = vmatprep.subr.mxu0 0.0
    %596 = vmatpush1.msra.mxu0 0.0
    %597 = vmatprep.subr.mxu0 0.0
    %598 = vmatpush1.msra.mxu0 0.0
    %599 = vmatprep.subr.mxu0 0.0
    %600 = vmatpush1.msra.mxu0 0.0
    %601 = vmatprep.subr.mxu0 0.0
    %602 = vmatpush1.msra.mxu0 0.0
    %603 = vmatprep.subr.mxu0 0.0
    %604 = vmatpush1.msra.mxu0 0.0
    %605 = vmatprep.subr.mxu0 0.0
    %606 = vmatpush1.msra.mxu0 0.0
    %607 = vmatprep.subr.mxu0 0.0
    %608 = vmatpush1.msra.mxu0 0.0
    %609 = vmatprep.subr.mxu0 0.0
    %610 = vmatpush1.msra.mxu0 0.0
    %611 = vmatprep.subr.mxu0 0.0
    %612 = vmatpush1.msra.mxu0 0.0
    %613 = vmatprep.subr.mxu0 0.0
    %614 = vmatpush1.msra.mxu0 0.0
    %615 = vmatprep.subr.mxu0 0.0
    %616 = vmatpush1.msra.mxu0 0.0
    %617 = vmatprep.subr.mxu0 0.0
    %618 = vmatpush1.msra.mxu0 0.0
    %619 = vmatprep.subr.mxu0 0.0
    %620 = vmatpush1.msra.mxu0 0.0
    %621 = vmatprep.subr.mxu0 0.0
    %622 = vmatpush1.msra.mxu0 0.0
    %623 = vmatprep.subr.mxu0 0.0
    %624 = vmatpush1.msra.mxu0 0.0
    %625 = vmatprep.subr.mxu0 0.0
    %626 = vmatpush1.msra.mxu0 0.0
    %627 = vmatprep.subr.mxu0 0.0
    %628 = vmatpush1.msra.mxu0 0.0
    %629 = vmatprep.subr.mxu0 0.0
    %630 = vmatpush1.msra.mxu0 0.0
    %631 = vmatprep.subr.mxu0 0.0
    %632 = vmatpush1.msra.mxu0 0.0
    %633 = vmatprep.subr.mxu0 0.0
    %634 = vmatpush1.msra.mxu0 0.0
    %635 = vmatprep.subr.mxu0 0.0
    %636 = vmatpush1.msra.mxu0 0.0
    %637 = vmatprep.subr.mxu0 0.0
    %638 = vmatpush1.msra.mxu0 0.0
    %639 = vmatprep.mubr.f32.mxu0 0.0
    %640 = vmatmul.mubr.f32.gmra.mrb[0].mxu0 %v213
    %v641 = vpop.f32.mrb[0].mxu0
    %v642 = vadd.f32 0.0, %v641
    %v643 = vpop.f32.mrb[0].mxu0
    %644 = vmatprep.mubr.f32.mxu0 0.0
    %645 = vmatmul.mubr.f32.gmra.mrb[0].mxu0 %v216
    %v646 = vpop.f32.mrb[0].mxu0
    %v647 = vadd.f32 0.0, %v646
    %v648 = vpop.f32.mrb[0].mxu0
    %649 = vmatprep.mubr.f32.mxu0 0.0
    %650 = vmatmul.mubr.f32.gmra.mrb[0].mxu0 %v219
    %v651 = vpop.f32.mrb[0].mxu0
    %v652 = vadd.f32 0.0, %v651
    %v653 = vpop.f32.mrb[0].mxu0
    %654 = vmatprep.mubr.f32.mxu0 0.0
    %655 = vmatmul.mubr.f32.gmra.mrb[0].mxu0 %v222
    %v656 = vpop.f32.mrb[0].mxu0
    %v657 = vadd.f32 0.0, %v656
    %v658 = vpop.f32.mrb[0].mxu0
    %659 = vmatprep.mubr.f32.mxu0 0.0
    %660 = vmatmul.mubr.f32.gmra.mrb[0].mxu0 %v225
    %v661 = vpop.f32.mrb[0].mxu0
    %v662 = vadd.f32 0.0, %v661
    %v663 = vpop.f32.mrb[0].mxu0
    %664 = vmatprep.mubr.f32.mxu0 0.0
    %665 = vmatmul.mubr.f32.gmra.mrb[0].mxu0 %v228
    %v666 = vpop.f32.mrb[0].mxu0
    %v667 = vadd.f32 0.0, %v666
    %v668 = vpop.f32.mrb[0].mxu0
    %669 = vmatprep.mubr.f32.mxu0 0.0
    %670 = vmatmul.mubr.f32.gmra.mrb[0].mxu0 %v231
    %v671 = vpop.f32.mrb[0].mxu0
    %v672 = vadd.f32 0.0, %v671
    %v673 = vpop.f32.mrb[0].mxu0
    %674 = vmatprep.mubr.f32.mxu0 0.0
    %675 = vmatmul.mubr.f32.gmra.mrb[0].mxu0 %v234
    %v676 = vpop.f32.mrb[0].mxu0
    %v677 = vadd.f32 0.0, %v676
    %v678 = vpop.f32.mrb[0].mxu0
    %679 = vdwg.mxu0
    %v681 = vsel %vm470, %v551, 0
    %v684 = vsel %vm470, %v552, 0
    %v687 = vsel %vm470, %v553, 0
    %v690 = vsel %vm470, %v554, 0
    %v693 = vsel %vm470, %v555, 0
    %v696 = vsel %vm470, %v556, 0
    %v699 = vsel %vm470, %v557, 0
    %v702 = vsel %vm470, %v558, 0
    %704 = vmatprep.subr.mxu0 0.0
    %705 = vmatpush1.msra.mxu0 %v642
    %706 = vmatprep.subr.mxu0 0.0
    %707 = vmatpush1.msra.mxu0 %v647
    %708 = vmatprep.subr.mxu0 0.0
    %709 = vmatpush1.msra.mxu0 %v652
    %710 = vmatprep.subr.mxu0 0.0
    %711 = vmatpush1.msra.mxu0 %v657
    %712 = vmatprep.subr.mxu0 0.0
    %713 = vmatpush1.msra.mxu0 %v662
    %714 = vmatprep.subr.mxu0 0.0
    %715 = vmatpush1.msra.mxu0 %v667
    %716 = vmatprep.subr.mxu0 0.0
    %717 = vmatpush1.msra.mxu0 %v672
    %718 = vmatprep.subr.mxu0 0.0
    %719 = vmatpush1.msra.mxu0 %v677
    %720 = vmatprep.subr.mxu0 0.0
    %721 = vmatpush1.msra.mxu0 0.0
    %722 = vmatprep.subr.mxu0 0.0
    %723 = vmatpush1.msra.mxu0 0.0
    %724 = vmatprep.subr.mxu0 0.0
    %725 = vmatpush1.msra.mxu0 0.0
    %726 = vmatprep.subr.mxu0 0.0
    %727 = vmatpush1.msra.mxu0 0.0
    %728 = vmatprep.subr.mxu0 0.0
    %729 = vmatpush1.msra.mxu0 0.0
    %730 = vmatprep.subr.mxu0 0.0
    %731 = vmatpush1.msra.mxu0 0.0
    %732 = vmatprep.subr.mxu0 0.0
    %733 = vmatpush1.msra.mxu0 0.0
    %734 = vmatprep.subr.mxu0 0.0
    %735 = vmatpush1.msra.mxu0 0.0
    %736 = vmatprep.subr.mxu0 0.0
    %737 = vmatpush1.msra.mxu0 0.0
    %738 = vmatprep.subr.mxu0 0.0
    %739 = vmatpush1.msra.mxu0 0.0
    %740 = vmatprep.subr.mxu0 0.0
    %741 = vmatpush1.msra.mxu0 0.0
    %742 = vmatprep.subr.mxu0 0.0
    %743 = vmatpush1.msra.mxu0 0.0
    %744 = vmatprep.subr.mxu0 0.0
    %745 = vmatpush1.msra.mxu0 0.0
    %746 = vmatprep.subr.mxu0 0.0
    %747 = vmatpush1.msra.mxu0 0.0
    %748 = vmatprep.subr.mxu0 0.0
    %749 = vmatpush1.msra.mxu0 0.0
    %750 = vmatprep.subr.mxu0 0.0
    %751 = vmatpush1.msra.mxu0 0.0
    %752 = vmatprep.subr.mxu0 0.0
    %753 = vmatpush1.msra.mxu0 0.0
    %754 = vmatprep.subr.mxu0 0.0
    %755 = vmatpush1.msra.mxu0 0.0
    %756 = vmatprep.subr.mxu0 0.0
    %757 = vmatpush1.msra.mxu0 0.0
    %758 = vmatprep.subr.mxu0 0.0
    %759 = vmatpush1.msra.mxu0 0.0
    %760 = vmatprep.subr.mxu0 0.0
    %761 = vmatpush1.msra.mxu0 0.0
    %762 = vmatprep.subr.mxu0 0.0
    %763 = vmatpush1.msra.mxu0 0.0
    %764 = vmatprep.subr.mxu0 0.0
    %765 = vmatpush1.msra.mxu0 0.0
    %766 = vmatprep.subr.mxu0 0.0
    %767 = vmatpush1.msra.mxu0 0.0
    %768 = vmatprep.mubr.f32.mxu0 0.0
    %769 = vmatmul.mubr.f32.gmra.mrb[0].mxu0 %v681
    %v770 = vpop.f32.mrb[0].mxu0
    %v771 = vadd.f32 0.0, %v770
    %v772 = vpop.f32.mrb[0].mxu0
    %773 = vmatprep.mubr.f32.mxu0 0.0
    %774 = vmatmul.mubr.f32.gmra.mrb[0].mxu0 %v684
    %v775 = vpop.f32.mrb[0].mxu0
    %v776 = vadd.f32 0.0, %v775
    %v777 = vpop.f32.mrb[0].mxu0
    %778 = vmatprep.mubr.f32.mxu0 0.0
    %779 = vmatmul.mubr.f32.gmra.mrb[0].mxu0 %v687
    %v780 = vpop.f32.mrb[0].mxu0
    %v781 = vadd.f32 0.0, %v780
    %v782 = vpop.f32.mrb[0].mxu0
    %783 = vmatprep.mubr.f32.mxu0 0.0
    %784 = vmatmul.mubr.f32.gmra.mrb[0].mxu0 %v690
    %v785 = vpop.f32.mrb[0].mxu0
    %v786 = vadd.f32 0.0, %v785
    %v787 = vpop.f32.mrb[0].mxu0
    %788 = vmatprep.mubr.f32.mxu0 0.0
    %789 = vmatmul.mubr.f32.gmra.mrb[0].mxu0 %v693
    %v790 = vpop.f32.mrb[0].mxu0
    %v791 = vadd.f32 0.0, %v790
    %v792 = vpop.f32.mrb[0].mxu0
    %793 = vmatprep.mubr.f32.mxu0 0.0
    %794 = vmatmul.mubr.f32.gmra.mrb[0].mxu0 %v696
    %v795 = vpop.f32.mrb[0].mxu0
    %v796 = vadd.f32 0.0, %v795
    %v797 = vpop.f32.mrb[0].mxu0
    %798 = vmatprep.mubr.f32.mxu0 0.0
    %799 = vmatmul.mubr.f32.gmra.mrb[0].mxu0 %v699
    %v800 = vpop.f32.mrb[0].mxu0
    %v801 = vadd.f32 0.0, %v800
    %v802 = vpop.f32.mrb[0].mxu0
    %803 = vmatprep.mubr.f32.mxu0 0.0
    %804 = vmatmul.mubr.f32.gmra.mrb[0].mxu0 %v702
    %v805 = vpop.f32.mrb[0].mxu0
    %v806 = vadd.f32 0.0, %v805
    %v807 = vpop.f32.mrb[0].mxu0
    %808 = vdwg.mxu0
    %v809 = vadd.f32 %v771, %v781
    %v810 = vadd.f32 %v776, %v786
    %v811 = vadd.f32 %v809, %v791
    %v812 = vadd.f32 %v810, %v796
    %v813 = vadd.f32 %v811, %v801
    %v814 = vadd.f32 %v812, %v806
    %v815 = vlaneseq
    %v816 = vshrl.u32 %v815, 7
    %v817 = vsub.s32 0, %v816
    %v818 = vrot.slane %v186, %v817
    %v819 = vadd.f32 %v813, %v818
    %v820 = vadd.f32 %v814, %v818
    %v821 = vadd.f32 %v819, %v150
    %v822 = vadd.f32 %v820, %v155
    %v823 = vsel %vm211, %v821, 0.0
    %824 = vadd.xlane.f32.xlu0 %v823
    %v825 = vpop.xlane.xlu0 %824
    %v826 = vsel %vm211, %v822, 0.0
    %827 = vadd.xlane.f32.xlu0 %v826
    %v828 = vpop.xlane.xlu0 %827
    %v829 = vrcp.pop 32.0
    %v830 = vmul.f32 %v825, %v829
    %v831 = vmul.f32 %v828, %v829
    %v832 = vsub.f32 %v821, %v830
    %v833 = vsub.f32 %v822, %v831
    %v834 = vmul.f32 %v832, %v832
    %v835 = vmul.f32 %v833, %v833
    %v836 = vsel %vm211, %v834, 0.0
    %837 = vadd.xlane.f32.xlu0 %v836
    %v838 = vpop.xlane.xlu0 %837
    %v839 = vsel %vm211, %v835, 0.0
    %840 = vadd.xlane.f32.xlu0 %v839
    %v841 = vpop.xlane.xlu0 %840
    %v842 = vmul.f32 %v838, %v829
    %v843 = vmul.f32 %v841, %v829
    %v844 = vadd.f32 %v842, 1e-05
    %v845 = vadd.f32 %v843, 1e-05
    %v846 = vrsqrt.pop %v844
    %v847 = vrsqrt.pop %v845
    %v848 = vmul.f32 %v832, %v846
    %v849 = vmul.f32 %v833, %v847
    %v850 = vlaneseq
    %v851 = vshrl.u32 %v850, 7
    %v852 = vsub.s32 1, %v851
    %v853 = vrot.slane %v186, %v852
    %v854 = vmul.f32 %v848, %v853
    %v855 = vmul.f32 %v849, %v853
    %v856 = vlaneseq
    %v857 = vshrl.u32 %v856, 7
    %v858 = vsub.s32 2, %v857
    %v859 = vrot.slane %v186, %v858
    %v860 = vadd.f32 %v854, %v859
    %v861 = vadd.f32 %v855, %v859
    %v862 = vlaneseq
    %v863 = vshrl.u32 %v862, 7
    %v864 = vsub.s32 3, %v863
    %v865 = vrot.slane %v186, %v864
    %870 = vrot.lane.b32.xlu0 %v178, 64
    %v871 = vpop.permute.xlu0 %870
    %872 = vrot.lane.b32.xlu0 %v179, 64
    %v873 = vpop.permute.xlu0 %872
    %874 = vrot.lane.b32.xlu0 %v180, 64
    %v875 = vpop.permute.xlu0 %874
    %876 = vrot.lane.b32.xlu0 %v181, 64
    %v877 = vpop.permute.xlu0 %876
    %878 = vrot.lane.b32.xlu0 %v182, 64
    %v879 = vpop.permute.xlu0 %878
    %880 = vrot.lane.b32.xlu0 %v183, 64
    %v881 = vpop.permute.xlu0 %880
    %882 = vrot.lane.b32.xlu0 %v184, 64
    %v883 = vpop.permute.xlu0 %882
    %884 = vrot.lane.b32.xlu0 %v185, 64
    %v885 = vpop.permute.xlu0 %884
    %v886 = vsel %vm470, %v871, %v873
    %v887 = vsel %vm470, %v875, %v877
    %v888 = vsel %vm470, %v879, %v881
    %v889 = vsel %vm470, %v883, %v885
    %v895 = vsel %vm211, %v860, 0
    %v898 = vsel %vm211, %v861, 0
    %900 = vmatprep.subr.mxu0 0.0
    %901 = vmatpush1.msra.mxu0 %v886
    %902 = vmatprep.subr.mxu0 0.0
    %903 = vmatpush1.msra.mxu0 %v887
    %904 = vmatprep.subr.mxu0 0.0
    %905 = vmatpush1.msra.mxu0 %v888
    %906 = vmatprep.subr.mxu0 0.0
    %907 = vmatpush1.msra.mxu0 %v889
    %908 = vmatprep.subr.mxu0 0.0
    %909 = vmatpush1.msra.mxu0 0.0
    %910 = vmatprep.subr.mxu0 0.0
    %911 = vmatpush1.msra.mxu0 0.0
    %912 = vmatprep.subr.mxu0 0.0
    %913 = vmatpush1.msra.mxu0 0.0
    %914 = vmatprep.subr.mxu0 0.0
    %915 = vmatpush1.msra.mxu0 0.0
    %916 = vmatprep.subr.mxu0 0.0
    %917 = vmatpush1.msra.mxu0 0.0
    %918 = vmatprep.subr.mxu0 0.0
    %919 = vmatpush1.msra.mxu0 0.0
    %920 = vmatprep.subr.mxu0 0.0
    %921 = vmatpush1.msra.mxu0 0.0
    %922 = vmatprep.subr.mxu0 0.0
    %923 = vmatpush1.msra.mxu0 0.0
    %924 = vmatprep.subr.mxu0 0.0
    %925 = vmatpush1.msra.mxu0 0.0
    %926 = vmatprep.subr.mxu0 0.0
    %927 = vmatpush1.msra.mxu0 0.0
    %928 = vmatprep.subr.mxu0 0.0
    %929 = vmatpush1.msra.mxu0 0.0
    %930 = vmatprep.subr.mxu0 0.0
    %931 = vmatpush1.msra.mxu0 0.0
    %932 = vmatprep.subr.mxu0 0.0
    %933 = vmatpush1.msra.mxu0 0.0
    %934 = vmatprep.subr.mxu0 0.0
    %935 = vmatpush1.msra.mxu0 0.0
    %936 = vmatprep.subr.mxu0 0.0
    %937 = vmatpush1.msra.mxu0 0.0
    %938 = vmatprep.subr.mxu0 0.0
    %939 = vmatpush1.msra.mxu0 0.0
    %940 = vmatprep.subr.mxu0 0.0
    %941 = vmatpush1.msra.mxu0 0.0
    %942 = vmatprep.subr.mxu0 0.0
    %943 = vmatpush1.msra.mxu0 0.0
    %944 = vmatprep.subr.mxu0 0.0
    %945 = vmatpush1.msra.mxu0 0.0
    %946 = vmatprep.subr.mxu0 0.0
    %947 = vmatpush1.msra.mxu0 0.0
    %948 = vmatprep.subr.mxu0 0.0
    %949 = vmatpush1.msra.mxu0 0.0
    %950 = vmatprep.subr.mxu0 0.0
    %951 = vmatpush1.msra.mxu0 0.0
    %952 = vmatprep.subr.mxu0 0.0
    %953 = vmatpush1.msra.mxu0 0.0
    %954 = vmatprep.subr.mxu0 0.0
    %955 = vmatpush1.msra.mxu0 0.0
    %956 = vmatprep.subr.mxu0 0.0
    %957 = vmatpush1.msra.mxu0 0.0
    %958 = vmatprep.subr.mxu0 0.0
    %959 = vmatpush1.msra.mxu0 0.0
    %960 = vmatprep.subr.mxu0 0.0
    %961 = vmatpush1.msra.mxu0 0.0
    %962 = vmatprep.subr.mxu0 0.0
    %963 = vmatpush1.msra.mxu0 0.0
    %964 = vmatprep.mubr.f32.mxu0 0.0
    %965 = vmatmul.mubr.f32.gmra.mrb[0].mxu0 %v895
    %v966 = vpop.f32.mrb[0].mxu0
    %v967 = vadd.f32 %v865, %v966
    %v968 = vpop.f32.mrb[0].mxu0
    %969 = vmatprep.mubr.f32.mxu0 0.0
    %970 = vmatmul.mubr.f32.gmra.mrb[0].mxu0 %v898
    %v971 = vpop.f32.mrb[0].mxu0
    %v972 = vadd.f32 %v865, %v971
    %v973 = vpop.f32.mrb[0].mxu0
    %974 = vdwg.mxu0
    %v975 = vmax.f32 %v967, 0.0
    %v976 = vmax.f32 %v972, 0.0
    %v977 = vlaneseq
    %v978 = vshrl.u32 %v977, 7
    %v979 = vsub.s32 4, %v978
    %v980 = vrot.slane %v186, %v979
    %981 = vmatprep.subr.mxu0 0.0
    %982 = vmatpush1.msra.mxu0 %v187
    %983 = vmatprep.subr.mxu0 0.0
    %984 = vmatpush1.msra.mxu0 %v188
    %985 = vmatprep.subr.mxu0 0.0
    %986 = vmatpush1.msra.mxu0 %v189
    %987 = vmatprep.subr.mxu0 0.0
    %988 = vmatpush1.msra.mxu0 %v190
    %989 = vmatprep.subr.mxu0 0.0
    %990 = vmatpush1.msra.mxu0 %v191
    %991 = vmatprep.subr.mxu0 0.0
    %992 = vmatpush1.msra.mxu0 %v192
    %993 = vmatprep.subr.mxu0 0.0
    %994 = vmatpush1.msra.mxu0 %v193
    %995 = vmatprep.subr.mxu0 0.0
    %996 = vmatpush1.msra.mxu0 %v194
    %997 = vmatprep.subr.mxu0 0.0
    %998 = vmatpush1.msra.mxu0 %v195
    %999 = vmatprep.subr.mxu0 0.0
    %1000 = vmatpush1.msra.mxu0 %v196
    %1001 = vmatprep.subr.mxu0 0.0
    %1002 = vmatpush1.msra.mxu0 %v197
    %1003 = vmatprep.subr.mxu0 0.0
    %1004 = vmatpush1.msra.mxu0 %v198
    %1005 = vmatprep.subr.mxu0 0.0
    %1006 = vmatpush1.msra.mxu0 %v199
    %1007 = vmatprep.subr.mxu0 0.0
    %1008 = vmatpush1.msra.mxu0 %v200
    %1009 = vmatprep.subr.mxu0 0.0
    %1010 = vmatpush1.msra.mxu0 %v201
    %1011 = vmatprep.subr.mxu0 0.0
    %1012 = vmatpush1.msra.mxu0 %v202
    %1013 = vmatprep.subr.mxu0 0.0
    %1014 = vmatpush1.msra.mxu0 0.0
    %1015 = vmatprep.subr.mxu0 0.0
    %1016 = vmatpush1.msra.mxu0 0.0
    %1017 = vmatprep.subr.mxu0 0.0
    %1018 = vmatpush1.msra.mxu0 0.0
    %1019 = vmatprep.subr.mxu0 0.0
    %1020 = vmatpush1.msra.mxu0 0.0
    %1021 = vmatprep.subr.mxu0 0.0
    %1022 = vmatpush1.msra.mxu0 0.0
    %1023 = vmatprep.subr.mxu0 0.0
    %1024 = vmatpush1.msra.mxu0 0.0
    %1025 = vmatprep.subr.mxu0 0.0
    %1026 = vmatpush1.msra.mxu0 0.0
    %1027 = vmatprep.subr.mxu0 0.0
    %1028 = vmatpush1.msra.mxu0 0.0
    %1029 = vmatprep.subr.mxu0 0.0
    %1030 = vmatpush1.msra.mxu0 0.0
    %1031 = vmatprep.subr.mxu0 0.0
    %1032 = vmatpush1.msra.mxu0 0.0
    %1033 = vmatprep.subr.mxu0 0.0
    %1034 = vmatpush1.msra.mxu0 0.0
    %1035 = vmatprep.subr.mxu0 0.0
    %1036 = vmatpush1.msra.mxu0 0.0
    %1037 = vmatprep.subr.mxu0 0.0
    %1038 = vmatpush1.msra.mxu0 0.0
    %1039 = vmatprep.subr.mxu0 0.0
    %1040 = vmatpush1.msra.mxu0 0.0
    %1041 = vmatprep.subr.mxu0 0.0
    %1042 = vmatpush1.msra.mxu0 0.0
    %1043 = vmatprep.subr.mxu0 0.0
    %1044 = vmatpush1.msra.mxu0 0.0
    %1045 = vmatprep.mubr.f32.mxu0 0.0
    %1046 = vmatmul.mubr.f32.gmra.mrb[0].mxu0 %v975
    %v1047 = vpop.f32.mrb[0].mxu0
    %v1048 = vadd.f32 %v980, %v1047
    %v1049 = vpop.f32.mrb[0].mxu0
    %1050 = vmatprep.mubr.f32.mxu0 0.0
    %1051 = vmatmul.mubr.f32.gmra.mrb[0].mxu0 %v976
    %v1052 = vpop.f32.mrb[0].mxu0
    %v1053 = vadd.f32 %v980, %v1052
    %v1054 = vpop.f32.mrb[0].mxu0
    %1055 = vdwg.mxu0
    %v1056 = vadd.f32 %v1048, %v860
    %v1057 = vadd.f32 %v1053, %v861
    %v1058 = vsel %vm211, %v1056, 0.0
    %1059 = vadd.xlane.f32.xlu0 %v1058
    %v1060 = vpop.xlane.xlu0 %1059
    %v1061 = vsel %vm211, %v1057, 0.0
    %1062 = vadd.xlane.f32.xlu0 %v1061
    %v1063 = vpop.xlane.xlu0 %1062
    %v1064 = vmul.f32 %v1060, %v829
    %v1065 = vmul.f32 %v1063, %v829
    %v1066 = vsub.f32 %v1056, %v1064
    %v1067 = vsub.f32 %v1057, %v1065
    %v1068 = vmul.f32 %v1066, %v1066
    %v1069 = vmul.f32 %v1067, %v1067
    %v1070 = vsel %vm211, %v1068, 0.0
    %1071 = vadd.xlane.f32.xlu0 %v1070
    %v1072 = vpop.xlane.xlu0 %1071
    %v1073 = vsel %vm211, %v1069, 0.0
    %1074 = vadd.xlane.f32.xlu0 %v1073
    %v1075 = vpop.xlane.xlu0 %1074
    %v1076 = vmul.f32 %v1072, %v829
    %v1077 = vmul.f32 %v1075, %v829
    %v1078 = vadd.f32 %v1076, 1e-05
    %v1079 = vadd.f32 %v1077, 1e-05
    %v1080 = vrsqrt.pop %v1078
    %v1081 = vrsqrt.pop %v1079
    %v1082 = vmul.f32 %v1066, %v1080
    %v1083 = vmul.f32 %v1067, %v1081
    %v1084 = vlaneseq
    %v1085 = vshrl.u32 %v1084, 7
    %v1086 = vsub.s32 5, %v1085
    %v1087 = vrot.slane %v186, %v1086
    %v1088 = vmul.f32 %v1082, %v1087
    %v1089 = vmul.f32 %v1083, %v1087
    %v1090 = vlaneseq
    %v1091 = vshrl.u32 %v1090, 7
    %v1092 = vsub.s32 6, %v1091
    %v1093 = vrot.slane %v186, %v1092
    %v1094 = vadd.f32 %v1088, %v1093
    %v1095 = vadd.f32 %v1089, %v1093
    %s1096 = scalar_lea.vmem %s3, 80
    %v1097 = vld [vmem:[%s1096] sm:$0xff]
    %v1098 = vld [vmem:[%s1096 + $0x8] sm:$0xff]
    %v1099 = vld [vmem:[%s1096 + $0x10] sm:$0xff]
    %v1100 = vld [vmem:[%s1096 + $0x18] sm:$0xff]
    %v1101 = vld [vmem:[%s1096 + $0x20] sm:$0xff]
    %v1102 = vld [vmem:[%s1096 + $0x28] sm:$0xff]
    %v1103 = vld [vmem:[%s1096 + $0x30] sm:$0xff]
    %v1104 = vld [vmem:[%s1096 + $0x38] sm:$0xff]
    %v1105 = vld [vmem:[%s1096 + $0x40] sm:$0xff]
    %s1106 = scalar_lea.vmem %s4, 128
    %v1107 = vld [vmem:[%s1106] sm:$0xff]
    %v1108 = vld [vmem:[%s1106 + $0x8] sm:$0xff]
    %v1109 = vld [vmem:[%s1106 + $0x10] sm:$0xff]
    %v1110 = vld [vmem:[%s1106 + $0x18] sm:$0xff]
    %v1111 = vld [vmem:[%s1106 + $0x20] sm:$0xff]
    %v1112 = vld [vmem:[%s1106 + $0x28] sm:$0xff]
    %v1113 = vld [vmem:[%s1106 + $0x30] sm:$0xff]
    %v1114 = vld [vmem:[%s1106 + $0x38] sm:$0xff]
    %v1115 = vld [vmem:[%s1106 + $0x40] sm:$0xff]
    %v1116 = vld [vmem:[%s1106 + $0x48] sm:$0xff]
    %v1117 = vld [vmem:[%s1106 + $0x50] sm:$0xff]
    %v1118 = vld [vmem:[%s1106 + $0x58] sm:$0xff]
    %v1119 = vld [vmem:[%s1106 + $0x60] sm:$0xff]
    %v1120 = vld [vmem:[%s1106 + $0x68] sm:$0xff]
    %v1121 = vld [vmem:[%s1106 + $0x70] sm:$0xff]
    %v1122 = vld [vmem:[%s1106 + $0x78] sm:$0xff]
    %v1123 = vsel %vm168, %v1094, 0.0
    %v1124 = vsel %vm168, %v1095, 0.0
    %v1125 = vsel %vm171, %v1094, 0.0
    %v1126 = vsel %vm171, %v1095, 0.0
    %v1127 = vsel %vm174, %v1094, 0.0
    %v1128 = vsel %vm174, %v1095, 0.0
    %v1129 = vsel %vm177, %v1094, 0.0
    %v1130 = vsel %vm177, %v1095, 0.0
    %v1132 = vsel %vm211, %v1123, 0
    %v1135 = vsel %vm211, %v1124, 0
    %v1138 = vsel %vm211, %v1125, 0
    %v1141 = vsel %vm211, %v1126, 0
    %v1144 = vsel %vm211, %v1127, 0
    %v1147 = vsel %vm211, %v1128, 0
    %v1150 = vsel %vm211, %v1129, 0
    %v1153 = vsel %vm211, %v1130, 0
    %1155 = vmatprep.subr.mxu0 0.0
    %1156 = vmatpush1.msra.mxu0 %v1097
    %1157 = vmatprep.subr.mxu0 0.0
    %1158 = vmatpush1.msra.mxu0 %v1099
    %1159 = vmatprep.subr.mxu0 0.0
    %1160 = vmatpush1.msra.mxu0 %v1101
    %1161 = vmatprep.subr.mxu0 0.0
    %1162 = vmatpush1.msra.mxu0 %v1103
    %1163 = vmatprep.subr.mxu0 0.0
    %1164 = vmatpush1.msra.mxu0 0.0
    %1165 = vmatprep.subr.mxu0 0.0
    %1166 = vmatpush1.msra.mxu0 0.0
    %1167 = vmatprep.subr.mxu0 0.0
    %1168 = vmatpush1.msra.mxu0 0.0
    %1169 = vmatprep.subr.mxu0 0.0
    %1170 = vmatpush1.msra.mxu0 0.0
    %1171 = vmatprep.subr.mxu0 0.0
    %1172 = vmatpush1.msra.mxu0 0.0
    %1173 = vmatprep.subr.mxu0 0.0
    %1174 = vmatpush1.msra.mxu0 0.0
    %1175 = vmatprep.subr.mxu0 0.0
    %1176 = vmatpush1.msra.mxu0 0.0
    %1177 = vmatprep.subr.mxu0 0.0
    %1178 = vmatpush1.msra.mxu0 0.0
    %1179 = vmatprep.subr.mxu0 0.0
    %1180 = vmatpush1.msra.mxu0 0.0
    %1181 = vmatprep.subr.mxu0 0.0
    %1182 = vmatpush1.msra.mxu0 0.0
    %1183 = vmatprep.subr.mxu0 0.0
    %1184 = vmatpush1.msra.mxu0 0.0
    %1185 = vmatprep.subr.mxu0 0.0
    %1186 = vmatpush1.msra.mxu0 0.0
    %1187 = vmatprep.subr.mxu0 0.0
    %1188 = vmatpush1.msra.mxu0 0.0
    %1189 = vmatprep.subr.mxu0 0.0
    %1190 = vmatpush1.msra.mxu0 0.0
    %1191 = vmatprep.subr.mxu0 0.0
    %1192 = vmatpush1.msra.mxu0 0.0
    %1193 = vmatprep.subr.mxu0 0.0
    %1194 = vmatpush1.msra.mxu0 0.0
    %1195 = vmatprep.subr.mxu0 0.0
    %1196 = vmatpush1.msra.mxu0 0.0
    %1197 = vmatprep.subr.mxu0 0.0
    %1198 = vmatpush1.msra.mxu0 0.0
    %1199 = vmatprep.subr.mxu0 0.0
    %1200 = vmatpush1.msra.mxu0 0.0
    %1201 = vmatprep.subr.mxu0 0.0
    %1202 = vmatpush1.msra.mxu0 0.0
    %1203 = vmatprep.subr.mxu0 0.0
    %1204 = vmatpush1.msra.mxu0 0.0
    %1205 = vmatprep.subr.mxu0 0.0
    %1206 = vmatpush1.msra.mxu0 0.0
    %1207 = vmatprep.subr.mxu0 0.0
    %1208 = vmatpush1.msra.mxu0 0.0
    %1209 = vmatprep.subr.mxu0 0.0
    %1210 = vmatpush1.msra.mxu0 0.0
    %1211 = vmatprep.subr.mxu0 0.0
    %1212 = vmatpush1.msra.mxu0 0.0
    %1213 = vmatprep.subr.mxu0 0.0
    %1214 = vmatpush1.msra.mxu0 0.0
    %1215 = vmatprep.subr.mxu0 0.0
    %1216 = vmatpush1.msra.mxu0 0.0
    %1217 = vmatprep.subr.mxu0 0.0
    %1218 = vmatpush1.msra.mxu0 0.0
    %1219 = vmatprep.mubr.f32.mxu0 0.0
    %1220 = vmatmul.mubr.f32.gmra.mrb[0].mxu0 %v1132
    %v1221 = vpop.f32.mrb[0].mxu0
    %v1222 = vadd.f32 0.0, %v1221
    %v1223 = vpop.f32.mrb[0].mxu0
    %1224 = vmatprep.mubr.f32.mxu0 0.0
    %1225 = vmatmul.mubr.f32.gmra.mrb[0].mxu0 %v1135
    %v1226 = vpop.f32.mrb[0].mxu0
    %v1227 = vadd.f32 0.0, %v1226
    %v1228 = vpop.f32.mrb[0].mxu0
    %1229 = vmatprep.mubr.f32.mxu0 0.0
    %1230 = vmatmul.mubr.f32.gmra.mrb[0].mxu0 %v1138
    %v1231 = vpop.f32.mrb[0].mxu0
    %v1232 = vadd.f32 0.0, %v1231
    %v1233 = vpop.f32.mrb[0].mxu0
    %1234 = vmatprep.mubr.f32.mxu0 0.0
    %1235 = vmatmul.mubr.f32.gmra.mrb[0].mxu0 %v1141
    %v1236 = vpop.f32.mrb[0].mxu0
    %v1237 = vadd.f32 0.0, %v1236
    %v1238 = vpop.f32.mrb[0].mxu0
    %1239 = vmatprep.mubr.f32.mxu0 0.0
    %1240 = vmatmul.mubr.f32.gmra.mrb[0].mxu0 %v1144
    %v1241 = vpop.f32.mrb[0].mxu0
    %v1242 = vadd.f32 0.0, %v1241
    %v1243 = vpop.f32.mrb[0].mxu0
    %1244 = vmatprep.mubr.f32.mxu0 0.0
    %1245 = vmatmul.mubr.f32.gmra.mrb[0].mxu0 %v1147
    %v1246 = vpop.f32.mrb[0].mxu0
    %v1247 = vadd.f32 0.0, %v1246
    %v1248 = vpop.f32.mrb[0].mxu0
    %1249 = vmatprep.mubr.f32.mxu0 0.0
    %1250 = vmatmul.mubr.f32.gmra.mrb[0].mxu0 %v1150
    %v1251 = vpop.f32.mrb[0].mxu0
    %v1252 = vadd.f32 0.0, %v1251
    %v1253 = vpop.f32.mrb[0].mxu0
    %1254 = vmatprep.mubr.f32.mxu0 0.0
    %1255 = vmatmul.mubr.f32.gmra.mrb[0].mxu0 %v1153
    %v1256 = vpop.f32.mrb[0].mxu0
    %v1257 = vadd.f32 0.0, %v1256
    %v1258 = vpop.f32.mrb[0].mxu0
    %1259 = vdwg.mxu0
    %v1261 = vsel %vm211, %v1222, 0
    %v1264 = vsel %vm211, %v1227, 0
    %v1267 = vsel %vm211, %v1232, 0
    %v1270 = vsel %vm211, %v1237, 0
    %v1273 = vsel %vm211, %v1242, 0
    %v1276 = vsel %vm211, %v1247, 0
    %v1279 = vsel %vm211, %v1252, 0
    %v1282 = vsel %vm211, %v1257, 0
    %1284 = vmatprep.subr.mxu0 0.0
    %1285 = vmatpush1.xpose.msra.mxu0 %v1132
    %1286 = vmatprep.subr.mxu0 0.0
    %1287 = vmatpush1.xpose.msra.mxu0 %v1135
    %1288 = vmatprep.subr.mxu0 0.0
    %1289 = vmatpush1.xpose.msra.mxu0 %v1138
    %1290 = vmatprep.subr.mxu0 0.0
    %1291 = vmatpush1.xpose.msra.mxu0 %v1141
    %1292 = vmatprep.subr.mxu0 0.0
    %1293 = vmatpush1.xpose.msra.mxu0 %v1144
    %1294 = vmatprep.subr.mxu0 0.0
    %1295 = vmatpush1.xpose.msra.mxu0 %v1147
    %1296 = vmatprep.subr.mxu0 0.0
    %1297 = vmatpush1.xpose.msra.mxu0 %v1150
    %1298 = vmatprep.subr.mxu0 0.0
    %1299 = vmatpush1.xpose.msra.mxu0 %v1153
    %1300 = vmatprep.subr.mxu0 0.0
    %1301 = vmatpush1.xpose.msra.mxu0 0.0
    %1302 = vmatprep.subr.mxu0 0.0
    %1303 = vmatpush1.xpose.msra.mxu0 0.0
    %1304 = vmatprep.subr.mxu0 0.0
    %1305 = vmatpush1.xpose.msra.mxu0 0.0
    %1306 = vmatprep.subr.mxu0 0.0
    %1307 = vmatpush1.xpose.msra.mxu0 0.0
    %1308 = vmatprep.subr.mxu0 0.0
    %1309 = vmatpush1.xpose.msra.mxu0 0.0
    %1310 = vmatprep.subr.mxu0 0.0
    %1311 = vmatpush1.xpose.msra.mxu0 0.0
    %1312 = vmatprep.subr.mxu0 0.0
    %1313 = vmatpush1.xpose.msra.mxu0 0.0
    %1314 = vmatprep.subr.mxu0 0.0
    %1315 = vmatpush1.xpose.msra.mxu0 0.0
    %1316 = vmatprep.subr.mxu0 0.0
    %1317 = vmatpush1.xpose.msra.mxu0 0.0
    %1318 = vmatprep.subr.mxu0 0.0
    %1319 = vmatpush1.xpose.msra.mxu0 0.0
    %1320 = vmatprep.subr.mxu0 0.0
    %1321 = vmatpush1.xpose.msra.mxu0 0.0
    %1322 = vmatprep.subr.mxu0 0.0
    %1323 = vmatpush1.xpose.msra.mxu0 0.0
    %1324 = vmatprep.subr.mxu0 0.0
    %1325 = vmatpush1.xpose.msra.mxu0 0.0
    %1326 = vmatprep.subr.mxu0 0.0
    %1327 = vmatpush1.xpose.msra.mxu0 0.0
    %1328 = vmatprep.subr.mxu0 0.0
    %1329 = vmatpush1.xpose.msra.mxu0 0.0
    %1330 = vmatprep.subr.mxu0 0.0
    %1331 = vmatpush1.xpose.msra.mxu0 0.0
    %1332 = vmatprep.subr.mxu0 0.0
    %1333 = vmatpush1.xpose.msra.mxu0 0.0
    %1334 = vmatprep.subr.mxu0 0.0
    %1335 = vmatpush1.xpose.msra.mxu0 0.0
    %1336 = vmatprep.subr.mxu0 0.0
    %1337 = vmatpush1.xpose.msra.mxu0 0.0
    %1338 = vmatprep.subr.mxu0 0.0
    %1339 = vmatpush1.xpose.msra.mxu0 0.0
    %1340 = vmatprep.subr.mxu0 0.0
    %1341 = vmatpush1.xpose.msra.mxu0 0.0
    %1342 = vmatprep.subr.mxu0 0.0
    %1343 = vmatpush1.xpose.msra.mxu0 0.0
    %1344 = vmatprep.subr.mxu0 0.0
    %1345 = vmatpush1.xpose.msra.mxu0 0.0
    %1346 = vmatprep.subr.mxu0 0.0
    %1347 = vmatpush1.xpose.msra.mxu0 0.0
    %1348 = vmatprep.mubr.f32.mxu0 0.0
    %1349 = vmatmul.mubr.f32.gmra.mrb[0].mxu0 %v1261
    %v1350 = vpop.f32.mrb[0].mxu0
    %v1351 = vadd.f32 %v158, %v1350
    %v1352 = vpop.f32.mrb[0].mxu0
    %1353 = vmatprep.mubr.f32.mxu0 0.0
    %1354 = vmatmul.mubr.f32.gmra.mrb[0].mxu0 %v1264
    %v1355 = vpop.f32.mrb[0].mxu0
    %v1356 = vadd.f32 %v159, %v1355
    %v1357 = vpop.f32.mrb[0].mxu0
    %1358 = vmatprep.mubr.f32.mxu0 0.0
    %1359 = vmatmul.mubr.f32.gmra.mrb[0].mxu0 %v1267
    %v1360 = vpop.f32.mrb[0].mxu0
    %v1361 = vadd.f32 %v160, %v1360
    %v1362 = vpop.f32.mrb[0].mxu0
    %1363 = vmatprep.mubr.f32.mxu0 0.0
    %1364 = vmatmul.mubr.f32.gmra.mrb[0].mxu0 %v1270
    %v1365 = vpop.f32.mrb[0].mxu0
    %v1366 = vadd.f32 %v161, %v1365
    %v1367 = vpop.f32.mrb[0].mxu0
    %1368 = vmatprep.mubr.f32.mxu0 0.0
    %1369 = vmatmul.mubr.f32.gmra.mrb[0].mxu0 %v1273
    %v1370 = vpop.f32.mrb[0].mxu0
    %v1371 = vadd.f32 %v162, %v1370
    %v1372 = vpop.f32.mrb[0].mxu0
    %1373 = vmatprep.mubr.f32.mxu0 0.0
    %1374 = vmatmul.mubr.f32.gmra.mrb[0].mxu0 %v1276
    %v1375 = vpop.f32.mrb[0].mxu0
    %v1376 = vadd.f32 %v163, %v1375
    %v1377 = vpop.f32.mrb[0].mxu0
    %1378 = vmatprep.mubr.f32.mxu0 0.0
    %1379 = vmatmul.mubr.f32.gmra.mrb[0].mxu0 %v1279
    %v1380 = vpop.f32.mrb[0].mxu0
    %v1381 = vadd.f32 %v164, %v1380
    %v1382 = vpop.f32.mrb[0].mxu0
    %1383 = vmatprep.mubr.f32.mxu0 0.0
    %1384 = vmatmul.mubr.f32.gmra.mrb[0].mxu0 %v1282
    %v1385 = vpop.f32.mrb[0].mxu0
    %v1386 = vadd.f32 %v165, %v1385
    %v1387 = vpop.f32.mrb[0].mxu0
    %1388 = vdwg.mxu0
    %v1389 = vsel %vm470, %v1351, -inf
    %1390 = vmax.xlane.f32.xlu0 %v1389
    %v1391 = vpop.xlane.xlu0 %1390
    %v1392 = vsel %vm470, %v1356, -inf
    %1393 = vmax.xlane.f32.xlu0 %v1392
    %v1394 = vpop.xlane.xlu0 %1393
    %v1395 = vsel %vm470, %v1361, -inf
    %1396 = vmax.xlane.f32.xlu0 %v1395
    %v1397 = vpop.xlane.xlu0 %1396
    %v1398 = vsel %vm470, %v1366, -inf
    %1399 = vmax.xlane.f32.xlu0 %v1398
    %v1400 = vpop.xlane.xlu0 %1399
    %v1401 = vsel %vm470, %v1371, -inf
    %1402 = vmax.xlane.f32.xlu0 %v1401
    %v1403 = vpop.xlane.xlu0 %1402
    %v1404 = vsel %vm470, %v1376, -inf
    %1405 = vmax.xlane.f32.xlu0 %v1404
    %v1406 = vpop.xlane.xlu0 %1405
    %v1407 = vsel %vm470, %v1381, -inf
    %1408 = vmax.xlane.f32.xlu0 %v1407
    %v1409 = vpop.xlane.xlu0 %1408
    %v1410 = vsel %vm470, %v1386, -inf
    %1411 = vmax.xlane.f32.xlu0 %v1410
    %v1412 = vpop.xlane.xlu0 %1411
    %v1413 = vsub.f32 %v1351, %v1391
    %v1414 = vsub.f32 %v1356, %v1394
    %v1415 = vsub.f32 %v1361, %v1397
    %v1416 = vsub.f32 %v1366, %v1400
    %v1417 = vsub.f32 %v1371, %v1403
    %v1418 = vsub.f32 %v1376, %v1406
    %v1419 = vsub.f32 %v1381, %v1409
    %v1420 = vsub.f32 %v1386, %v1412
    %v1421 = vmul.f32 %v1413, 1.442695
    %v1422 = vpow.pop %v1421
    %v1423 = vmul.f32 %v1414, 1.442695
    %v1424 = vpow.pop %v1423
    %v1425 = vmul.f32 %v1415, 1.442695
    %v1426 = vpow.pop %v1425
    %v1427 = vmul.f32 %v1416, 1.442695
    %v1428 = vpow.pop %v1427
    %v1429 = vmul.f32 %v1417, 1.442695
    %v1430 = vpow.pop %v1429
    %v1431 = vmul.f32 %v1418, 1.442695
    %v1432 = vpow.pop %v1431
    %v1433 = vmul.f32 %v1419, 1.442695
    %v1434 = vpow.pop %v1433
    %v1435 = vmul.f32 %v1420, 1.442695
    %v1436 = vpow.pop %v1435
    %v1437 = vsel %vm470, %v1422, 0.0
    %1438 = vadd.xlane.f32.xlu0 %v1437
    %v1439 = vpop.xlane.xlu0 %1438
    %v1440 = vsel %vm470, %v1424, 0.0
    %1441 = vadd.xlane.f32.xlu0 %v1440
    %v1442 = vpop.xlane.xlu0 %1441
    %v1443 = vsel %vm470, %v1426, 0.0
    %1444 = vadd.xlane.f32.xlu0 %v1443
    %v1445 = vpop.xlane.xlu0 %1444
    %v1446 = vsel %vm470, %v1428, 0.0
    %1447 = vadd.xlane.f32.xlu0 %v1446
    %v1448 = vpop.xlane.xlu0 %1447
    %v1449 = vsel %vm470, %v1430, 0.0
    %1450 = vadd.xlane.f32.xlu0 %v1449
    %v1451 = vpop.xlane.xlu0 %1450
    %v1452 = vsel %vm470, %v1432, 0.0
    %1453 = vadd.xlane.f32.xlu0 %v1452
    %v1454 = vpop.xlane.xlu0 %1453
    %v1455 = vsel %vm470, %v1434, 0.0
    %1456 = vadd.xlane.f32.xlu0 %v1455
    %v1457 = vpop.xlane.xlu0 %1456
    %v1458 = vsel %vm470, %v1436, 0.0
    %1459 = vadd.xlane.f32.xlu0 %v1458
    %v1460 = vpop.xlane.xlu0 %1459
    %v1461 = vrcp.pop %v1439
    %v1462 = vrcp.pop %v1442
    %v1463 = vrcp.pop %v1445
    %v1464 = vrcp.pop %v1448
    %v1465 = vrcp.pop %v1451
    %v1466 = vrcp.pop %v1454
    %v1467 = vrcp.pop %v1457
    %v1468 = vrcp.pop %v1460
    %v1469 = vmul.f32 %v1422, %v1461
    %v1470 = vmul.f32 %v1424, %v1462
    %v1471 = vmul.f32 %v1426, %v1463
    %v1472 = vmul.f32 %v1428, %v1464
    %v1473 = vmul.f32 %v1430, %v1465
    %v1474 = vmul.f32 %v1432, %v1466
    %v1475 = vmul.f32 %v1434, %v1467
    %v1476 = vmul.f32 %v1436, %v1468
    %1481 = vrot.lane.b32.xlu0 %v1097, 96
    %v1482 = vpop.permute.xlu0 %1481
    %1483 = vrot.lane.b32.xlu0 %v1099, 96
    %v1484 = vpop.permute.xlu0 %1483
    %1485 = vrot.lane.b32.xlu0 %v1101, 96
    %v1486 = vpop.permute.xlu0 %1485
    %1487 = vrot.lane.b32.xlu0 %v1103, 96
    %v1488 = vpop.permute.xlu0 %1487
    %1493 = vmatprep.subr.mxu0 0.0
    %1494 = vmatpush1.msra.mxu0 %v1482
    %1495 = vmatprep.subr.mxu0 0.0
    %1496 = vmatpush1.msra.mxu0 %v1484
    %1497 = vmatprep.subr.mxu0 0.0
    %1498 = vmatpush1.msra.mxu0 %v1486
    %1499 = vmatprep.subr.mxu0 0.0
    %1500 = vmatpush1.msra.mxu0 %v1488
    %1501 = vmatprep.subr.mxu0 0.0
    %1502 = vmatpush1.msra.mxu0 0.0
    %1503 = vmatprep.subr.mxu0 0.0
    %1504 = vmatpush1.msra.mxu0 0.0
    %1505 = vmatprep.subr.mxu0 0.0
    %1506 = vmatpush1.msra.mxu0 0.0
    %1507 = vmatprep.subr.mxu0 0.0
    %1508 = vmatpush1.msra.mxu0 0.0
    %1509 = vmatprep.subr.mxu0 0.0
    %1510 = vmatpush1.msra.mxu0 0.0
    %1511 = vmatprep.subr.mxu0 0.0
    %1512 = vmatpush1.msra.mxu0 0.0
    %1513 = vmatprep.subr.mxu0 0.0
    %1514 = vmatpush1.msra.mxu0 0.0
    %1515 = vmatprep.subr.mxu0 0.0
    %1516 = vmatpush1.msra.mxu0 0.0
    %1517 = vmatprep.subr.mxu0 0.0
    %1518 = vmatpush1.msra.mxu0 0.0
    %1519 = vmatprep.subr.mxu0 0.0
    %1520 = vmatpush1.msra.mxu0 0.0
    %1521 = vmatprep.subr.mxu0 0.0
    %1522 = vmatpush1.msra.mxu0 0.0
    %1523 = vmatprep.subr.mxu0 0.0
    %1524 = vmatpush1.msra.mxu0 0.0
    %1525 = vmatprep.subr.mxu0 0.0
    %1526 = vmatpush1.msra.mxu0 0.0
    %1527 = vmatprep.subr.mxu0 0.0
    %1528 = vmatpush1.msra.mxu0 0.0
    %1529 = vmatprep.subr.mxu0 0.0
    %1530 = vmatpush1.msra.mxu0 0.0
    %1531 = vmatprep.subr.mxu0 0.0
    %1532 = vmatpush1.msra.mxu0 0.0
    %1533 = vmatprep.subr.mxu0 0.0
    %1534 = vmatpush1.msra.mxu0 0.0
    %1535 = vmatprep.subr.mxu0 0.0
    %1536 = vmatpush1.msra.mxu0 0.0
    %1537 = vmatprep.subr.mxu0 0.0
    %1538 = vmatpush1.msra.mxu0 0.0
    %1539 = vmatprep.subr.mxu0 0.0
    %1540 = vmatpush1.msra.mxu0 0.0
    %1541 = vmatprep.subr.mxu0 0.0
    %1542 = vmatpush1.msra.mxu0 0.0
    %1543 = vmatprep.subr.mxu0 0.0
    %1544 = vmatpush1.msra.mxu0 0.0
    %1545 = vmatprep.subr.mxu0 0.0
    %1546 = vmatpush1.msra.mxu0 0.0
    %1547 = vmatprep.subr.mxu0 0.0
    %1548 = vmatpush1.msra.mxu0 0.0
    %1549 = vmatprep.subr.mxu0 0.0
    %1550 = vmatpush1.msra.mxu0 0.0
    %1551 = vmatprep.subr.mxu0 0.0
    %1552 = vmatpush1.msra.mxu0 0.0
    %1553 = vmatprep.subr.mxu0 0.0
    %1554 = vmatpush1.msra.mxu0 0.0
    %1555 = vmatprep.subr.mxu0 0.0
    %1556 = vmatpush1.msra.mxu0 0.0
    %1557 = vmatprep.mubr.f32.mxu0 0.0
    %1558 = vmatmul.mubr.f32.gmra.mrb[0].mxu0 %v1132
    %v1559 = vpop.f32.mrb[0].mxu0
    %v1560 = vadd.f32 0.0, %v1559
    %v1561 = vpop.f32.mrb[0].mxu0
    %1562 = vmatprep.mubr.f32.mxu0 0.0
    %1563 = vmatmul.mubr.f32.gmra.mrb[0].mxu0 %v1135
    %v1564 = vpop.f32.mrb[0].mxu0
    %v1565 = vadd.f32 0.0, %v1564
    %v1566 = vpop.f32.mrb[0].mxu0
    %1567 = vmatprep.mubr.f32.mxu0 0.0
    %1568 = vmatmul.mubr.f32.gmra.mrb[0].mxu0 %v1138
    %v1569 = vpop.f32.mrb[0].mxu0
    %v1570 = vadd.f32 0.0, %v1569
    %v1571 = vpop.f32.mrb[0].mxu0
    %1572 = vmatprep.mubr.f32.mxu0 0.0
    %1573 = vmatmul.mubr.f32.gmra.mrb[0].mxu0 %v1141
    %v1574 = vpop.f32.mrb[0].mxu0
    %v1575 = vadd.f32 0.0, %v1574
    %v1576 = vpop.f32.mrb[0].mxu0
    %1577 = vmatprep.mubr.f32.mxu0 0.0
    %1578 = vmatmul.mubr.f32.gmra.mrb[0].mxu0 %v1144
    %v1579 = vpop.f32.mrb[0].mxu0
    %v1580 = vadd.f32 0.0, %v1579
    %v1581 = vpop.f32.mrb[0].mxu0
    %1582 = vmatprep.mubr.f32.mxu0 0.0
    %1583 = vmatmul.mubr.f32.gmra.mrb[0].mxu0 %v1147
    %v1584 = vpop.f32.mrb[0].mxu0
    %v1585 = vadd.f32 0.0, %v1584
    %v1586 = vpop.f32.mrb[0].mxu0
    %1587 = vmatprep.mubr.f32.mxu0 0.0
    %1588 = vmatmul.mubr.f32.gmra.mrb[0].mxu0 %v1150
    %v1589 = vpop.f32.mrb[0].mxu0
    %v1590 = vadd.f32 0.0, %v1589
    %v1591 = vpop.f32.mrb[0].mxu0
    %1592 = vmatprep.mubr.f32.mxu0 0.0
    %1593 = vmatmul.mubr.f32.gmra.mrb[0].mxu0 %v1153
    %v1594 = vpop.f32.mrb[0].mxu0
    %v1595 = vadd.f32 0.0, %v1594
    %v1596 = vpop.f32.mrb[0].mxu0
    %1597 = vdwg.mxu0
    %v1599 = vsel %vm470, %v1469, 0
    %v1602 = vsel %vm470, %v1470, 0
    %v1605 = vsel %vm470, %v1471, 0
    %v1608 = vsel %vm470, %v1472, 0
    %v1611 = vsel %vm470, %v1473, 0
    %v1614 = vsel %vm470, %v1474, 0
    %v1617 = vsel %vm470, %v1475, 0
    %v1620 = vsel %vm470, %v1476, 0
    %1622 = vmatprep.subr.mxu0 0.0
    %1623 = vmatpush1.msra.mxu0 %v1560
    %1624 = vmatprep.subr.mxu0 0.0
    %1625 = vmatpush1.msra.mxu0 %v1565
    %1626 = vmatprep.subr.mxu0 0.0
    %1627 = vmatpush1.msra.mxu0 %v1570
    %1628 = vmatprep.subr.mxu0 0.0
    %1629 = vmatpush1.msra.mxu0 %v1575
    %1630 = vmatprep.subr.mxu0 0.0
    %1631 = vmatpush1.msra.mxu0 %v1580
    %1632 = vmatprep.subr.mxu0 0.0
    %1633 = vmatpush1.msra.mxu0 %v1585
    %1634 = vmatprep.subr.mxu0 0.0
    %1635 = vmatpush1.msra.mxu0 %v1590
    %1636 = vmatprep.subr.mxu0 0.0
    %1637 = vmatpush1.msra.mxu0 %v1595
    %1638 = vmatprep.subr.mxu0 0.0
    %1639 = vmatpush1.msra.mxu0 0.0
    %1640 = vmatprep.subr.mxu0 0.0
    %1641 = vmatpush1.msra.mxu0 0.0
    %1642 = vmatprep.subr.mxu0 0.0
    %1643 = vmatpush1.msra.mxu0 0.0
    %1644 = vmatprep.subr.mxu0 0.0
    %1645 = vmatpush1.msra.mxu0 0.0
    %1646 = vmatprep.subr.mxu0 0.0
    %1647 = vmatpush1.msra.mxu0 0.0
    %1648 = vmatprep.subr.mxu0 0.0
    %1649 = vmatpush1.msra.mxu0 0.0
    %1650 = vmatprep.subr.mxu0 0.0
    %1651 = vmatpush1.msra.mxu0 0.0
    %1652 = vmatprep.subr.mxu0 0.0
    %1653 = vmatpush1.msra.mxu0 0.0
    %1654 = vmatprep.subr.mxu0 0.0
    %1655 = vmatpush1.msra.mxu0 0.0
    %1656 = vmatprep.subr.mxu0 0.0
    %1657 = vmatpush1.msra.mxu0 0.0
    %1658 = vmatprep.subr.mxu0 0.0
    %1659 = vmatpush1.msra.mxu0 0.0
    %1660 = vmatprep.subr.mxu0 0.0
    %1661 = vmatpush1.msra.mxu0 0.0
    %1662 = vmatprep.subr.mxu0 0.0
    %1663 = vmatpush1.msra.mxu0 0.0
    %1664 = vmatprep.subr.mxu0 0.0
    %1665 = vmatpush1.msra.mxu0 0.0
    %1666 = vmatprep.subr.mxu0 0.0
    %1667 = vmatpush1.msra.mxu0 0.0
    %1668 = vmatprep.subr.mxu0 0.0
    %1669 = vmatpush1.msra.mxu0 0.0
    %1670 = vmatprep.subr.mxu0 0.0
    %1671 = vmatpush1.msra.mxu0 0.0
    %1672 = vmatprep.subr.mxu0 0.0
    %1673 = vmatpush1.msra.mxu0 0.0
    %1674 = vmatprep.subr.mxu0 0.0
    %1675 = vmatpush1.msra.mxu0 0.0
    %1676 = vmatprep.subr.mxu0 0.0
    %1677 = vmatpush1.msra.mxu0 0.0
    %1678 = vmatprep.subr.mxu0 0.0
    %1679 = vmatpush1.msra.mxu0 0.0
    %1680 = vmatprep.subr.mxu0 0.0
    %1681 = vmatpush1.msra.mxu0 0.0
    %1682 = vmatprep.subr.mxu0 0.0
    %1683 = vmatpush1.msra.mxu0 0.0
    %1684 = vmatprep.subr.mxu0 0.0
    %1685 = vmatpush1.msra.mxu0 0.0
    %1686 = vmatprep.mubr.f32.mxu0 0.0
    %1687 = vmatmul.mubr.f32.gmra.mrb[0].mxu0 %v1599
    %v1688 = vpop.f32.mrb[0].mxu0
    %v1689 = vadd.f32 0.0, %v1688
    %v1690 = vpop.f32.mrb[0].mxu0
    %1691 = vmatprep.mubr.f32.mxu0 0.0
    %1692 = vmatmul.mubr.f32.gmra.mrb[0].mxu0 %v1602
    %v1693 = vpop.f32.mrb[0].mxu0
    %v1694 = vadd.f32 0.0, %v1693
    %v1695 = vpop.f32.mrb[0].mxu0
    %1696 = vmatprep.mubr.f32.mxu0 0.0
    %1697 = vmatmul.mubr.f32.gmra.mrb[0].mxu0 %v1605
    %v1698 = vpop.f32.mrb[0].mxu0
    %v1699 = vadd.f32 0.0, %v1698
    %v1700 = vpop.f32.mrb[0].mxu0
    %1701 = vmatprep.mubr.f32.mxu0 0.0
    %1702 = vmatmul.mubr.f32.gmra.mrb[0].mxu0 %v1608
    %v1703 = vpop.f32.mrb[0].mxu0
    %v1704 = vadd.f32 0.0, %v1703
    %v1705 = vpop.f32.mrb[0].mxu0
    %1706 = vmatprep.mubr.f32.mxu0 0.0
    %1707 = vmatmul.mubr.f32.gmra.mrb[0].mxu0 %v1611
    %v1708 = vpop.f32.mrb[0].mxu0
    %v1709 = vadd.f32 0.0, %v1708
    %v1710 = vpop.f32.mrb[0].mxu0
    %1711 = vmatprep.mubr.f32.mxu0 0.0
    %1712 = vmatmul.mubr.f32.gmra.mrb[0].mxu0 %v1614
    %v1713 = vpop.f32.mrb[0].mxu0
    %v1714 = vadd.f32 0.0, %v1713
    %v1715 = vpop.f32.mrb[0].mxu0
    %1716 = vmatprep.mubr.f32.mxu0 0.0
    %1717 = vmatmul.mubr.f32.gmra.mrb[0].mxu0 %v1617
    %v1718 = vpop.f32.mrb[0].mxu0
    %v1719 = vadd.f32 0.0, %v1718
    %v1720 = vpop.f32.mrb[0].mxu0
    %1721 = vmatprep.mubr.f32.mxu0 0.0
    %1722 = vmatmul.mubr.f32.gmra.mrb[0].mxu0 %v1620
    %v1723 = vpop.f32.mrb[0].mxu0
    %v1724 = vadd.f32 0.0, %v1723
    %v1725 = vpop.f32.mrb[0].mxu0
    %1726 = vdwg.mxu0
    %v1727 = vadd.f32 %v1689, %v1699
    %v1728 = vadd.f32 %v1694, %v1704
    %v1729 = vadd.f32 %v1727, %v1709
    %v1730 = vadd.f32 %v1728, %v1714
    %v1731 = vadd.f32 %v1729, %v1719
    %v1732 = vadd.f32 %v1730, %v1724
    %v1733 = vlaneseq
    %v1734 = vshrl.u32 %v1733, 7
    %v1735 = vsub.s32 0, %v1734
    %v1736 = vrot.slane %v1105, %v1735
    %v1737 = vadd.f32 %v1731, %v1736
    %v1738 = vadd.f32 %v1732, %v1736
    %v1739 = vadd.f32 %v1737, %v1094
    %v1740 = vadd.f32 %v1738, %v1095
    %v1741 = vsel %vm211, %v1739, 0.0
    %1742 = vadd.xlane.f32.xlu0 %v1741
    %v1743 = vpop.xlane.xlu0 %1742
    %v1744 = vsel %vm211, %v1740, 0.0
    %1745 = vadd.xlane.f32.xlu0 %v1744
    %v1746 = vpop.xlane.xlu0 %1745
    %v1747 = vmul.f32 %v1743, %v829
    %v1748 = vmul.f32 %v1746, %v829
    %v1749 = vsub.f32 %v1739, %v1747
    %v1750 = vsub.f32 %v1740, %v1748
    %v1751 = vmul.f32 %v1749, %v1749
    %v1752 = vmul.f32 %v1750, %v1750
    %v1753 = vsel %vm211, %v1751, 0.0
    %1754 = vadd.xlane.f32.xlu0 %v1753
    %v1755 = vpop.xlane.xlu0 %1754
    %v1756 = vsel %vm211, %v1752, 0.0
    %1757 = vadd.xlane.f32.xlu0 %v1756
    %v1758 = vpop.xlane.xlu0 %1757
    %v1759 = vmul.f32 %v1755, %v829
    %v1760 = vmul.f32 %v1758, %v829
    %v1761 = vadd.f32 %v1759, 1e-05
    %v1762 = vadd.f32 %v1760, 1e-05
    %v1763 = vrsqrt.pop %v1761
    %v1764 = vrsqrt.pop %v1762
    %v1765 = vmul.f32 %v1749, %v1763
    %v1766 = vmul.f32 %v1750, %v1764
    %v1767 = vlaneseq
    %v1768 = vshrl.u32 %v1767, 7
    %v1769 = vsub.s32 1, %v1768
    %v1770 = vrot.slane %v1105, %v1769
    %v1771 = vmul.f32 %v1765, %v1770
    %v1772 = vmul.f32 %v1766, %v1770
    %v1773 = vlaneseq
    %v1774 = vshrl.u32 %v1773, 7
    %v1775 = vsub.s32 2, %v1774
    %v1776 = vrot.slane %v1105, %v1775
    %v1777 = vadd.f32 %v1771, %v1776
    %v1778 = vadd.f32 %v1772, %v1776
    %v1779 = vlaneseq
    %v1780 = vshrl.u32 %v1779, 7
    %v1781 = vsub.s32 3, %v1780
    %v1782 = vrot.slane %v1105, %v1781
    %1787 = vrot.lane.b32.xlu0 %v1097, 64
    %v1788 = vpop.permute.xlu0 %1787
    %1789 = vrot.lane.b32.xlu0 %v1098, 64
    %v1790 = vpop.permute.xlu0 %1789
    %1791 = vrot.lane.b32.xlu0 %v1099, 64
    %v1792 = vpop.permute.xlu0 %1791
    %1793 = vrot.lane.b32.xlu0 %v1100, 64
    %v1794 = vpop.permute.xlu0 %1793
    %1795 = vrot.lane.b32.xlu0 %v1101, 64
    %v1796 = vpop.permute.xlu0 %1795
    %1797 = vrot.lane.b32.xlu0 %v1102, 64
    %v1798 = vpop.permute.xlu0 %1797
    %1799 = vrot.lane.b32.xlu0 %v1103, 64
    %v1800 = vpop.permute.xlu0 %1799
    %1801 = vrot.lane.b32.xlu0 %v1104, 64
    %v1802 = vpop.permute.xlu0 %1801
    %v1803 = vsel %vm470, %v1788, %v1790
    %v1804 = vsel %vm470, %v1792, %v1794
    %v1805 = vsel %vm470, %v1796, %v1798
    %v1806 = vsel %vm470, %v1800, %v1802
    %v1812 = vsel %vm211, %v1777, 0
    %v1815 = vsel %vm211, %v1778, 0
    %1817 = vmatprep.subr.mxu0 0.0
    %1818 = vmatpush1.msra.mxu0 %v1803
    %1819 = vmatprep.subr.mxu0 0.0
    %1820 = vmatpush1.msra.mxu0 %v1804
    %1821 = vmatprep.subr.mxu0 0.0
    %1822 = vmatpush1.msra.mxu0 %v1805
    %1823 = vmatprep.subr.mxu0 0.0
    %1824 = vmatpush1.msra.mxu0 %v1806
    %1825 = vmatprep.subr.mxu0 0.0
    %1826 = vmatpush1.msra.mxu0 0.0
    %1827 = vmatprep.subr.mxu0 0.0
    %1828 = vmatpush1.msra.mxu0 0.0
    %1829 = vmatprep.subr.mxu0 0.0
    %1830 = vmatpush1.msra.mxu0 0.0
    %1831 = vmatprep.subr.mxu0 0.0
    %1832 = vmatpush1.msra.mxu0 0.0
    %1833 = vmatprep.subr.mxu0 0.0
    %1834 = vmatpush1.msra.mxu0 0.0
    %1835 = vmatprep.subr.mxu0 0.0
    %1836 = vmatpush1.msra.mxu0 0.0
    %1837 = vmatprep.subr.mxu0 0.0
    %1838 = vmatpush1.msra.mxu0 0.0
    %1839 = vmatprep.subr.mxu0 0.0
    %1840 = vmatpush1.msra.mxu0 0.0
    %1841 = vmatprep.subr.mxu0 0.0
    %1842 = vmatpush1.msra.mxu0 0.0
    %1843 = vmatprep.subr.mxu0 0.0
    %1844 = vmatpush1.msra.mxu0 0.0
    %1845 = vmatprep.subr.mxu0 0.0
    %1846 = vmatpush1.msra.mxu0 0.0
    %1847 = vmatprep.subr.mxu0 0.0
    %1848 = vmatpush1.msra.mxu0 0.0
    %1849 = vmatprep.subr.mxu0 0.0
    %1850 = vmatpush1.msra.mxu0 0.0
    %1851 = vmatprep.subr.mxu0 0.0
    %1852 = vmatpush1.msra.mxu0 0.0
    %1853 = vmatprep.subr.mxu0 0.0
    %1854 = vmatpush1.msra.mxu0 0.0
    %1855 = vmatprep.subr.mxu0 0.0
    %1856 = vmatpush1.msra.mxu0 0.0
    %1857 = vmatprep.subr.mxu0 0.0
    %1858 = vmatpush1.msra.mxu0 0.0
    %1859 = vmatprep.subr.mxu0 0.0
    %1860 = vmatpush1.msra.mxu0 0.0
    %1861 = vmatprep.subr.mxu0 0.0
    %1862 = vmatpush1.msra.mxu0 0.0
    %1863 = vmatprep.subr.mxu0 0.0
    %1864 = vmatpush1.msra.mxu0 0.0
    %1865 = vmatprep.subr.mxu0 0.0
    %1866 = vmatpush1.msra.mxu0 0.0
    %1867 = vmatprep.subr.mxu0 0.0
    %1868 = vmatpush1.msra.mxu0 0.0
    %1869 = vmatprep.subr.mxu0 0.0
    %1870 = vmatpush1.msra.mxu0 0.0
    %1871 = vmatprep.subr.mxu0 0.0
    %1872 = vmatpush1.msra.mxu0 0.0
    %1873 = vmatprep.subr.mxu0 0.0
    %1874 = vmatpush1.msra.mxu0 0.0
    %1875 = vmatprep.subr.mxu0 0.0
    %1876 = vmatpush1.msra.mxu0 0.0
    %1877 = vmatprep.subr.mxu0 0.0
    %1878 = vmatpush1.msra.mxu0 0.0
    %1879 = vmatprep.subr.mxu0 0.0
    %1880 = vmatpush1.msra.mxu0 0.0
    %1881 = vmatprep.mubr.f32.mxu0 0.0
    %1882 = vmatmul.mubr.f32.gmra.mrb[0].mxu0 %v1812
    %v1883 = vpop.f32.mrb[0].mxu0
    %v1884 = vadd.f32 %v1782, %v1883
    %v1885 = vpop.f32.mrb[0].mxu0
    %1886 = vmatprep.mubr.f32.mxu0 0.0
    %1887 = vmatmul.mubr.f32.gmra.mrb[0].mxu0 %v1815
    %v1888 = vpop.f32.mrb[0].mxu0
    %v1889 = vadd.f32 %v1782, %v1888
    %v1890 = vpop.f32.mrb[0].mxu0
    %1891 = vdwg.mxu0
    %v1892 = vmax.f32 %v1884, 0.0
    %v1893 = vmax.f32 %v1889, 0.0
    %v1894 = vlaneseq
    %v1895 = vshrl.u32 %v1894, 7
    %v1896 = vsub.s32 4, %v1895
    %v1897 = vrot.slane %v1105, %v1896
    %1898 = vmatprep.subr.mxu0 0.0
    %1899 = vmatpush1.msra.mxu0 %v1107
    %1900 = vmatprep.subr.mxu0 0.0
    %1901 = vmatpush1.msra.mxu0 %v1108
    %1902 = vmatprep.subr.mxu0 0.0
    %1903 = vmatpush1.msra.mxu0 %v1109
    %1904 = vmatprep.subr.mxu0 0.0
    %1905 = vmatpush1.msra.mxu0 %v1110
    %1906 = vmatprep.subr.mxu0 0.0
    %1907 = vmatpush1.msra.mxu0 %v1111
    %1908 = vmatprep.subr.mxu0 0.0
    %1909 = vmatpush1.msra.mxu0 %v1112
    %1910 = vmatprep.subr.mxu0 0.0
    %1911 = vmatpush1.msra.mxu0 %v1113
    %1912 = vmatprep.subr.mxu0 0.0
    %1913 = vmatpush1.msra.mxu0 %v1114
    %1914 = vmatprep.subr.mxu0 0.0
    %1915 = vmatpush1.msra.mxu0 %v1115
    %1916 = vmatprep.subr.mxu0 0.0
    %1917 = vmatpush1.msra.mxu0 %v1116
    %1918 = vmatprep.subr.mxu0 0.0
    %1919 = vmatpush1.msra.mxu0 %v1117
    %1920 = vmatprep.subr.mxu0 0.0
    %1921 = vmatpush1.msra.mxu0 %v1118
    %1922 = vmatprep.subr.mxu0 0.0
    %1923 = vmatpush1.msra.mxu0 %v1119
    %1924 = vmatprep.subr.mxu0 0.0
    %1925 = vmatpush1.msra.mxu0 %v1120
    %1926 = vmatprep.subr.mxu0 0.0
    %1927 = vmatpush1.msra.mxu0 %v1121
    %1928 = vmatprep.subr.mxu0 0.0
    %1929 = vmatpush1.msra.mxu0 %v1122
    %1930 = vmatprep.subr.mxu0 0.0
    %1931 = vmatpush1.msra.mxu0 0.0
    %1932 = vmatprep.subr.mxu0 0.0
    %1933 = vmatpush1.msra.mxu0 0.0
    %1934 = vmatprep.subr.mxu0 0.0
    %1935 = vmatpush1.msra.mxu0 0.0
    %1936 = vmatprep.subr.mxu0 0.0
    %1937 = vmatpush1.msra.mxu0 0.0
    %1938 = vmatprep.subr.mxu0 0.0
    %1939 = vmatpush1.msra.mxu0 0.0
    %1940 = vmatprep.subr.mxu0 0.0
    %1941 = vmatpush1.msra.mxu0 0.0
    %1942 = vmatprep.subr.mxu0 0.0
    %1943 = vmatpush1.msra.mxu0 0.0
    %1944 = vmatprep.subr.mxu0 0.0
    %1945 = vmatpush1.msra.mxu0 0.0
    %1946 = vmatprep.subr.mxu0 0.0
    %1947 = vmatpush1.msra.mxu0 0.0
    %1948 = vmatprep.subr.mxu0 0.0
    %1949 = vmatpush1.msra.mxu0 0.0
    %1950 = vmatprep.subr.mxu0 0.0
    %1951 = vmatpush1.msra.mxu0 0.0
    %1952 = vmatprep.subr.mxu0 0.0
    %1953 = vmatpush1.msra.mxu0 0.0
    %1954 = vmatprep.subr.mxu0 0.0
    %1955 = vmatpush1.msra.mxu0 0.0
    %1956 = vmatprep.subr.mxu0 0.0
    %1957 = vmatpush1.msra.mxu0 0.0
    %1958 = vmatprep.subr.mxu0 0.0
    %1959 = vmatpush1.msra.mxu0 0.0
    %1960 = vmatprep.subr.mxu0 0.0
    %1961 = vmatpush1.msra.mxu0 0.0
    %1962 = vmatprep.mubr.f32.mxu0 0.0
    %1963 = vmatmul.mubr.f32.gmra.mrb[0].mxu0 %v1892
    %v1964 = vpop.f32.mrb[0].mxu0
    %v1965 = vadd.f32 %v1897, %v1964
    %v1966 = vpop.f32.mrb[0].mxu0
    %1967 = vmatprep.mubr.f32.mxu0 0.0
    %1968 = vmatmul.mubr.f32.gmra.mrb[0].mxu0 %v1893
    %v1969 = vpop.f32.mrb[0].mxu0
    %v1970 = vadd.f32 %v1897, %v1969
    %v1971 = vpop.f32.mrb[0].mxu0
    %1972 = vdwg.mxu0
    %v1973 = vadd.f32 %v1965, %v1777
    %v1974 = vadd.f32 %v1970, %v1778
    %v1975 = vsel %vm211, %v1973, 0.0
    %1976 = vadd.xlane.f32.xlu0 %v1975
    %v1977 = vpop.xlane.xlu0 %1976
    %v1978 = vsel %vm211, %v1974, 0.0
    %1979 = vadd.xlane.f32.xlu0 %v1978
    %v1980 = vpop.xlane.xlu0 %1979
    %v1981 = vmul.f32 %v1977, %v829
    %v1982 = vmul.f32 %v1980, %v829
    %v1983 = vsub.f32 %v1973, %v1981
    %v1984 = vsub.f32 %v1974, %v1982
    %v1985 = vmul.f32 %v1983, %v1983
    %v1986 = vmul.f32 %v1984, %v1984
    %v1987 = vsel %vm211, %v1985, 0.0
    %1988 = vadd.xlane.f32.xlu0 %v1987
    %v1989 = vpop.xlane.xlu0 %1988
    %v1990 = vsel %vm211, %v1986, 0.0
    %1991 = vadd.xlane.f32.xlu0 %v1990
    %v1992 = vpop.xlane.xlu0 %1991
    %v1993 = vmul.f32 %v1989, %v829
    %v1994 = vmul.f32 %v1992, %v829
    %v1995 = vadd.f32 %v1993, 1e-05
    %v1996 = vadd.f32 %v1994, 1e-05
    %v1997 = vrsqrt.pop %v1995
    %v1998 = vrsqrt.pop %v1996
    %v1999 = vmul.f32 %v1983, %v1997
    %v2000 = vmul.f32 %v1984, %v1998
    %v2001 = vlaneseq
    %v2002 = vshrl.u32 %v2001, 7
    %v2003 = vsub.s32 5, %v2002
    %v2004 = vrot.slane %v1105, %v2003
    %v2005 = vmul.f32 %v1999, %v2004
    %v2006 = vmul.f32 %v2000, %v2004
    %v2007 = vlaneseq
    %v2008 = vshrl.u32 %v2007, 7
    %v2009 = vsub.s32 6, %v2008
    %v2010 = vrot.slane %v1105, %v2009
    %v2011 = vadd.f32 %v2005, %v2010
    %v2012 = vadd.f32 %v2006, %v2010
    %2013 = vst.msk [vmem:[#allocation2] sm:$0xff] %vm211, %v2011
    %2014 = vst.msk [vmem:[#allocation2 + $0x8] sm:$0xff] %vm211, %v2012
    // Predicated region
    $region22: #{encoder_forward.1} parent=1 // pred_check
      _
    $region23: #{encoder_forward.1} parent=1 // pred_check_branch
      %2016 = sbr.rel (0) target = $region25
    $region24: #{encoder_forward.1} parent=1 // pred_region
      %s2018 = ssub.s32 256, 256
      %2019 = vsyncadd [#allocation3], %s2018
      %s2020 = sshll.u32 [#allocation2], 4
      %s2021 = int_to_ptr.vmem [resolvable:$true] %s2020
      %2026 = dma.vmem_to_hbm [thread:$0]  %s2021, 256, %s5, [#allocation3], 128, 128, 8
    $region25: #{encoder_forward.1} parent=1 // pred_fallthru
      _
    // Predicated region
    $region26: #{encoder_forward.1} parent=1 // pred_check
      _
    $region27: #{encoder_forward.1} parent=1 // pred_check_branch
      %2028 = sbr.rel (0) target = $region29
    $region28: #{encoder_forward.1} parent=1 // pred_region
      %2029 = dma.done [#allocation3], 256
    $region29: #{encoder_forward.1} parent=1 // pred_fallthru
      _
    %2030 = vsyncpa [#allocation3], 1

</llo_original>
